<compile_context>
chip_gen: v6e
topology: v6e:2x2x1
jax: 0.10.0
libtpu: 0.0.40
codegen_flags: <defaults>
</compile_context>

<pallas_src>
import functools
import math

import jax
import jax.numpy as jnp
from jax.experimental import pallas as pl
from jax.experimental.pallas import tpu as pltpu


# ----------------------------------------------------------------------------
# shared math
# ----------------------------------------------------------------------------
def _layernorm(x, g, b, eps=1e-5):
    mu = jnp.mean(x, axis=-1, keepdims=True)
    var = jnp.mean((x - mu) ** 2, axis=-1, keepdims=True)
    return (x - mu) * jax.lax.rsqrt(var + eps) * g + b


def _round_up(n, m):
    return ((n + m - 1) // m) * m


def _matmul_vpu_or_mxu(x, w, *, mxu_min_k=16):
    """x: (rows, K), w: (K, N) bf16 values -> f32 (rows, N).

    For tiny K the MXU is push/drain-latency bound (K=4/8 fills <4% of the
    systolic depth), so use a VPU broadcast-multiply-add ladder instead and
    keep the MXU slot free for the attention / FF matmuls."""
    k_dim = x.shape[-1]
    if k_dim >= mxu_min_k:
        return jnp.dot(x.astype(jnp.bfloat16), w, preferred_element_type=jnp.float32)
    acc = x[:, 0:1].astype(jnp.float32) * w[0:1, :].astype(jnp.float32)
    for kk in range(1, k_dim):
        acc = acc + x[:, kk:kk + 1].astype(jnp.float32) * w[kk:kk + 1, :].astype(jnp.float32)
    return acc


# ----------------------------------------------------------------------------
# fused kernel: backbone conv + ReLU + input_proj + encoder layer
# ----------------------------------------------------------------------------
def _fused_kernel(x_ref, bw_ref, pw_ref, wqkv_ref, wo_ref, w1_ref, w2_ref,
                  vec_ref, o_ref, *, seq_len):
    rows = x_ref.shape[0]            # bt * L
    bt = rows // seq_len
    n_bk = pw_ref.shape[0]           # backbone.num_channels
    D = wo_ref.shape[0]              # d_model
    d_ff = w1_ref.shape[1]

    # packed bias / LayerNorm vector table rows:
    #   0: backbone_b  1: proj_b  2: bqkv  3: bo
    #   4: ln1_g  5: ln1_b  6: b1  7: b2  8: ln2_g  9: ln2_b
    def vrow(r, w):
        return vec_ref[r:r + 1, :w]                                   # (1, w) f32

    # ---- backbone: 1x1 conv (tiny-K -> VPU path) + ReLU ---------------------
    x = x_ref[...]                                                    # (rows, C) bf16
    h = _matmul_vpu_or_mxu(x, bw_ref[...]) + vrow(0, n_bk)
    h = jnp.maximum(h, 0.0)

    # ---- input_proj: 1x1 conv ------------------------------------------------
    src = _matmul_vpu_or_mxu(h.astype(jnp.bfloat16), pw_ref[...]) + vrow(1, D)

    # ---- self-attention: fused QKV (1/sqrt(D) folded into the Q columns) -----
    src_b = src.astype(jnp.bfloat16)
    qkv = jnp.dot(src_b, wqkv_ref[...], preferred_element_type=jnp.float32)
    q = (qkv[:, 0:D] + vec_ref[2:3, 0:D]
         ).reshape(bt, seq_len, D).astype(jnp.bfloat16)
    k = (qkv[:, D:2 * D] + vec_ref[2:3, D:2 * D]
         ).reshape(bt, seq_len, D).astype(jnp.bfloat16)
    v = (qkv[:, 2 * D:3 * D] + vec_ref[2:3, 2 * D:3 * D]
         ).reshape(bt, seq_len, D).astype(jnp.bfloat16)

    s = jnp.einsum('bqd,bkd->bqk', q, k,
                   preferred_element_type=jnp.float32)                # (bt, L, L) f32
    s = s - jnp.max(s, axis=-1, keepdims=True)
    p = jnp.exp(s)   # f32 exp (v5e-safe); TODO(synk): bf16 exp on v6e/v7x if EUP-bound
    p = p * pl.reciprocal(jnp.sum(p, axis=-1, keepdims=True), approx=True)

    ctx = jnp.einsum('bqk,bkd->bqd', p.astype(jnp.bfloat16), v,
                     preferred_element_type=jnp.float32).reshape(rows, D)
    attn = jnp.dot(ctx.astype(jnp.bfloat16), wo_ref[...],
                   preferred_element_type=jnp.float32) + vrow(3, D)

    hh = _layernorm(src + attn, vrow(4, D), vrow(5, D))               # f32

    # ---- feed-forward ---------------------------------------------------------
    # TODO(synk): chunk rows via lax.fori_loop(unroll=True) for very large d_ff
    #             to bound the (rows, d_ff) f32 live range under v7x's 64 MiB.
    ff = jnp.dot(hh.astype(jnp.bfloat16), w1_ref[...],
                 preferred_element_type=jnp.float32) + vrow(6, d_ff)
    ff = jnp.maximum(ff, 0.0)
    ff = jnp.dot(ff.astype(jnp.bfloat16), w2_ref[...],
                 preferred_element_type=jnp.float32) + vrow(7, D)

    y = _layernorm(hh + ff, vrow(8, D), vrow(9, D))                   # (rows, D)
    o_ref[...] = y.astype(o_ref.dtype)


_WEIGHT_KEYS = ("bw", "pw", "wqkv", "wo", "w1", "w2", "vecs")


# ----------------------------------------------------------------------------
# tiling / budget helpers
# ----------------------------------------------------------------------------
def _tpu_budget():
    """Generation-aware tiling & scoped-VMEM budget (conservative fallback)."""
    try:
        vmem = int(pltpu.get_tpu_info().vmem_capacity_bytes)
    except Exception:
        return dict(max_rows=1024, vmem_limit=32 * 1024 * 1024, prefer_even_grid=False)
    if vmem <= 80 * 1024 * 1024:
        # v7x-class: 64 MiB per TensorCore, 2 TCs -> smaller tiles, capped VMEM,
        # prefer an even grid so the "parallel" axis splits across both cores.
        return dict(max_rows=512,
                    vmem_limit=min(40 * 1024 * 1024, vmem - 8 * 1024 * 1024),
                    prefer_even_grid=True)
    # v5e / v6e: 128 MiB physical -> raise scoped VMEM and amortize the
    # ~0.35 us per-grid-step overhead with larger row tiles.
    return dict(max_rows=2048, vmem_limit=64 * 1024 * 1024, prefer_even_grid=False)


def _pick_batch_tile(bn, seq_len, max_rows, *, prefer_even_grid=False):
    """Sequences per grid step.  Guarantees the (8,128) BlockSpec rule:
    either bt == bn (single full-array block) or bt*seq_len % 8 == 0."""
    def ok(bt):
        if bn % bt:
            return False
        if bt == bn:
            return True
        return (bt * seq_len) % 8 == 0 and bt * seq_len <= max_rows

    cands = [bt for bt in range(1, bn + 1) if ok(bt)]        # bn is always valid
    capped = [bt for bt in cands if bt * seq_len <= max_rows]
    pool = capped or cands   # may exceed max_rows only as the full-array fallback
    if prefer_even_grid and bn >= 2:
        even = [bt for bt in pool if (bn // bt) % 2 == 0]
        if even:
            return max(even)
    return max(pool)


# ----------------------------------------------------------------------------
# wrapper
# ----------------------------------------------------------------------------
def tranmodel_forward(x_bncl, params, *, max_rows_per_step=None, vmem_limit_bytes=None):
    """x_bncl: (B, N, C, L) -> (B*N, L, d_model)."""
    B, N, C, L = x_bncl.shape
    BN = B * N
    D = params["wo"].shape[0]

    budget = _tpu_budget()
    max_rows = max_rows_per_step if max_rows_per_step is not None else budget["max_rows"]
    vmem_limit = vmem_limit_bytes if vmem_limit_bytes is not None else budget["vmem_limit"]

    # rearrange 'b n c l -> (b n) c l', lay rows out as (BN*L, C) (row index =
    # sequence*L + position, channel/hidden on the lane axis), cast to bf16
    # (halves input DMA; first matmul consumes bf16 anyway).
    x = x_bncl.reshape(BN, C, L)
    x_rows = jnp.transpose(x, (0, 2, 1)).reshape(BN * L, C).astype(jnp.bfloat16)

    bt = _pick_batch_tile(BN, L, max_rows,
                          prefer_even_grid=budget["prefer_even_grid"])
    tile_rows = bt * L
    grid = (BN // bt,)

    in_specs = [pl.BlockSpec((tile_rows, C), lambda i: (i, 0))]
    # Weights / packed-vector table: constant index_map -> VMEM-resident, no
    # per-step re-DMA.  (Single-buffering them via pipeline_mode is a further
    # VMEM win for production weight sizes.)
    in_specs += [pl.BlockSpec(params[k].shape, lambda i: (0, 0)) for k in _WEIGHT_KEYS]

    out = pl.pallas_call(
        functools.partial(_fused_kernel, seq_len=L),
        out_shape=jax.ShapeDtypeStruct((BN * L, D), jnp.float32),
        grid=grid,
        in_specs=in_specs,
        out_specs=pl.BlockSpec((tile_rows, D), lambda i: (i, 0)),
        compiler_params=pltpu.CompilerParams(
            dimension_semantics=("parallel",),
            vmem_limit_bytes=vmem_limit,
        ),
    )(x_rows, *(params[k] for k in _WEIGHT_KEYS))

    return out.reshape(BN, L, D)


# ----------------------------------------------------------------------------
# parameters: raw (PyTorch-like) + kernel-ready preparation
# ----------------------------------------------------------------------------
def make_params(key, c_in, backbone_ch, d_model, d_ff):
    ks = jax.random.split(key, 20)
    f = lambda k, s: 0.02 * jax.random.normal(k, s, jnp.float32)
    enc = {
        "wq": f(ks[0], (d_model, d_model)), "bq": f(ks[10], (d_model,)),
        "wk": f(ks[1], (d_model, d_model)), "bk": f(ks[11], (d_model,)),
        "wv": f(ks[2], (d_model, d_model)), "bv": f(ks[12], (d_model,)),
        "wo": f(ks[3], (d_model, d_model)), "bo": f(ks[13], (d_model,)),
        "ln1_g": jnp.ones((d_model,), jnp.float32),
        "ln1_b": jnp.zeros((d_model,), jnp.float32),
        "w1": f(ks[4], (d_model, d_ff)), "b1": f(ks[14], (d_ff,)),
        "w2": f(ks[5], (d_ff, d_model)), "b2": f(ks[15], (d_model,)),
        "ln2_g": jnp.ones((d_model,), jnp.float32),
        "ln2_b": jnp.zeros((d_model,), jnp.float32),
    }
    return {
        "backbone_w": f(ks[6], (backbone_ch, c_in, 1)),
        "backbone_b": f(ks[7], (backbone_ch,)),
        "proj_w": f(ks[8], (d_model, backbone_ch, 1)),   # Conv1d(num_channels, hidden_dim, 1)
        "proj_b": f(ks[9], (d_model,)),
        "enc": enc,
    }


def prepare_params(raw):
    """Transpose conv weights, fuse QKV (scale folded into Q), pack all bias /
    LayerNorm vectors into one f32 table, cast MXU weights to bf16."""
    e = raw["enc"]
    D = e["wq"].shape[0]
    scale = 1.0 / math.sqrt(D)
    bf = lambda a: a.astype(jnp.bfloat16)

    # fused QKV weight, lane-padded to a multiple of 128 for dense MXU columns
    wqkv = jnp.concatenate([e["wq"] * scale, e["wk"], e["wv"]], axis=1)   # (D, 3D)
    n3 = wqkv.shape[1]
    wqkv = jnp.pad(wqkv, ((0, 0), (0, _round_up(n3, 128) - n3)))
    bqkv = jnp.concatenate([e["bq"] * scale, e["bk"], e["bv"]])           # (3D,)

    # packed bias / LayerNorm vector table (one BlockSpec input, one DMA)
    vec_list = [raw["backbone_b"], raw["proj_b"], bqkv, e["bo"],
                e["ln1_g"], e["ln1_b"], e["b1"], e["b2"],
                e["ln2_g"], e["ln2_b"]]
    maxw = _round_up(max(v.shape[0] for v in vec_list), 128)
    vecs = jnp.stack([jnp.pad(v.astype(jnp.float32), (0, maxw - v.shape[0]))
                      for v in vec_list])                                  # (10, maxw)

    return {
        "bw": bf(raw["backbone_w"][:, :, 0].T),     # (C, num_channels)
        "pw": bf(raw["proj_w"][:, :, 0].T),         # (num_channels, D)
        "wqkv": bf(wqkv),                           # (D, round_up(3D,128))
        "wo": bf(e["wo"]),
        "w1": bf(e["w1"]),
        "w2": bf(e["w2"]),
        "vecs": vecs,
    }


# ----------------------------------------------------------------------------
# pure-JAX f32 reference (mirrors Tranmodel.forward with the stand-in modules)
# ----------------------------------------------------------------------------
def tranmodel_reference(x_bncl, raw):
    B, N, C, L = x_bncl.shape
    x = x_bncl.reshape(B * N, C, L)
    w = raw["backbone_w"][:, :, 0]
    src = jnp.einsum('oc,bcl->bol', w, x) + raw["backbone_b"][None, :, None]
    src = jnp.maximum(src, 0.0)
    w = raw["proj_w"][:, :, 0]
    src = jnp.einsum('oc,bcl->bol', w, src) + raw["proj_b"][None, :, None]
    src = jnp.transpose(src, (0, 2, 1))                      # (BN, L, D)

    e = raw["enc"]
    D = e["wq"].shape[0]
    q = src @ e["wq"] + e["bq"]
    k = src @ e["wk"] + e["bk"]
    v = src @ e["wv"] + e["bv"]
    s = jnp.einsum('bqd,bkd->bqk', q, k) * (1.0 / math.sqrt(D))
    p = jax.nn.softmax(s, axis=-1)
    attn = jnp.einsum('bqk,bkd->bqd', p, v) @ e["wo"] + e["bo"]
    h = _layernorm(src + attn, e["ln1_g"], e["ln1_b"])
    ff = jnp.maximum(h @ e["w1"] + e["b1"], 0.0) @ e["w2"] + e["b2"]
    return _layernorm(h + ff, e["ln2_g"], e["ln2_b"])


# ----------------------------------------------------------------------------
if __name__ == "__main__":
    key = jax.random.PRNGKey(0)
    B, N, C, L = 2, 2, 4, 16
    backbone_ch = 8      # backbone.num_channels
    d_model = 32         # transformer.d_model
    d_ff = 64

    k_x, k_p = jax.random.split(key)
    x = jax.random.normal(k_x, (B, N, C, L), jnp.float32)
    raw = make_params(k_p, C, backbone_ch, d_model, d_ff)
    params = prepare_params(raw)

    forward = jax.jit(tranmodel_forward)
    out = jax.block_until_ready(forward(x, params))
    assert out.shape == (B * N, L, d_model)

    ref = tranmodel_reference(x, raw)
    max_err = float(jnp.max(jnp.abs(out - ref)))
    if not bool(jnp.allclose(out, ref, rtol=0.1, atol=0.1)):
        raise RuntimeError(f"mismatch vs f32 reference, max abs err = {max_err}")

    print("KERNEL_OK")
</pallas_src>

<mosaic_0001>
module attributes {stable_mosaic.version = 11 : i64} {
  func.func @_fused_kernel(%arg0: i32, %arg1: memref<64x4xbf16, #tpu.memory_space<vmem>>, %arg2: memref<4x8xbf16, #tpu.memory_space<vmem>>, %arg3: memref<8x32xbf16, #tpu.memory_space<vmem>>, %arg4: memref<32x128xbf16, #tpu.memory_space<vmem>>, %arg5: memref<32x32xbf16, #tpu.memory_space<vmem>>, %arg6: memref<32x64xbf16, #tpu.memory_space<vmem>>, %arg7: memref<64x32xbf16, #tpu.memory_space<vmem>>, %arg8: memref<10x128xf32, #tpu.memory_space<vmem>>, %arg9: memref<64x32xf32, #tpu.memory_space<vmem>>) attributes {dimension_semantics = [#tpu.dimension_semantics<parallel>], iteration_bounds = array<i64: 1>, scalar_prefetch = 0 : i64, scratch_operands = 0 : i64, tpu.core_type = #tpu.core_type<tc>, window_params = [{transform_indices = @transform_0, window_bounds = array<i64: 64, 4>}, {pipeline_mode = #tpu.pipeline_mode<synchronous>, transform_indices = @transform_1, window_bounds = array<i64: 4, 8>}, {pipeline_mode = #tpu.pipeline_mode<synchronous>, transform_indices = @transform_2, window_bounds = array<i64: 8, 32>}, {pipeline_mode = #tpu.pipeline_mode<synchronous>, transform_indices = @transform_3, window_bounds = array<i64: 32, 128>}, {pipeline_mode = #tpu.pipeline_mode<synchronous>, transform_indices = @transform_4, window_bounds = array<i64: 32, 32>}, {pipeline_mode = #tpu.pipeline_mode<synchronous>, transform_indices = @transform_5, window_bounds = array<i64: 32, 64>}, {pipeline_mode = #tpu.pipeline_mode<synchronous>, transform_indices = @transform_6, window_bounds = array<i64: 64, 32>}, {pipeline_mode = #tpu.pipeline_mode<synchronous>, transform_indices = @transform_7, window_bounds = array<i64: 10, 128>}, {transform_indices = @transform_8, window_bounds = array<i64: 64, 32>}]} {
    %c0 = arith.constant 0 : index
    %c0_0 = arith.constant 0 : index
    %0 = vector.load %arg1[%c0, %c0_0] : memref<64x4xbf16, #tpu.memory_space<vmem>>, vector<64x4xbf16>
    %c0_1 = arith.constant 0 : index
    %c0_2 = arith.constant 0 : index
    %1 = vector.load %arg2[%c0_1, %c0_2] : memref<4x8xbf16, #tpu.memory_space<vmem>>, vector<4x8xbf16>
    %2 = vector.extract_strided_slice %0 {offsets = [0, 0], sizes = [64, 1], strides = [1, 1]} : vector<64x4xbf16> to vector<64x1xbf16>
    %3 = arith.extf %2 : vector<64x1xbf16> to vector<64x1xf32>
    %4 = vector.extract_strided_slice %1 {offsets = [0, 0], sizes = [1, 8], strides = [1, 1]} : vector<4x8xbf16> to vector<1x8xbf16>
    %5 = arith.extf %4 : vector<1x8xbf16> to vector<1x8xf32>
    %6 = vector.broadcast %3 : vector<64x1xf32> to vector<64x8xf32>
    %7 = vector.broadcast %5 : vector<1x8xf32> to vector<64x8xf32>
    %8 = arith.mulf %6, %7 : vector<64x8xf32>
    %9 = vector.extract_strided_slice %0 {offsets = [0, 1], sizes = [64, 1], strides = [1, 1]} : vector<64x4xbf16> to vector<64x1xbf16>
    %10 = arith.extf %9 : vector<64x1xbf16> to vector<64x1xf32>
    %11 = vector.extract_strided_slice %1 {offsets = [1, 0], sizes = [1, 8], strides = [1, 1]} : vector<4x8xbf16> to vector<1x8xbf16>
    %12 = arith.extf %11 : vector<1x8xbf16> to vector<1x8xf32>
    %13 = vector.broadcast %10 : vector<64x1xf32> to vector<64x8xf32>
    %14 = vector.broadcast %12 : vector<1x8xf32> to vector<64x8xf32>
    %15 = arith.mulf %13, %14 : vector<64x8xf32>
    %16 = arith.addf %8, %15 : vector<64x8xf32>
    %17 = vector.extract_strided_slice %0 {offsets = [0, 2], sizes = [64, 1], strides = [1, 1]} : vector<64x4xbf16> to vector<64x1xbf16>
    %18 = arith.extf %17 : vector<64x1xbf16> to vector<64x1xf32>
    %19 = vector.extract_strided_slice %1 {offsets = [2, 0], sizes = [1, 8], strides = [1, 1]} : vector<4x8xbf16> to vector<1x8xbf16>
    %20 = arith.extf %19 : vector<1x8xbf16> to vector<1x8xf32>
    %21 = vector.broadcast %18 : vector<64x1xf32> to vector<64x8xf32>
    %22 = vector.broadcast %20 : vector<1x8xf32> to vector<64x8xf32>
    %23 = arith.mulf %21, %22 : vector<64x8xf32>
    %24 = arith.addf %16, %23 : vector<64x8xf32>
    %25 = vector.extract_strided_slice %0 {offsets = [0, 3], sizes = [64, 1], strides = [1, 1]} : vector<64x4xbf16> to vector<64x1xbf16>
    %26 = arith.extf %25 : vector<64x1xbf16> to vector<64x1xf32>
    %27 = vector.extract_strided_slice %1 {offsets = [3, 0], sizes = [1, 8], strides = [1, 1]} : vector<4x8xbf16> to vector<1x8xbf16>
    %28 = arith.extf %27 : vector<1x8xbf16> to vector<1x8xf32>
    %29 = vector.broadcast %26 : vector<64x1xf32> to vector<64x8xf32>
    %30 = vector.broadcast %28 : vector<1x8xf32> to vector<64x8xf32>
    %31 = arith.mulf %29, %30 : vector<64x8xf32>
    %32 = arith.addf %24, %31 : vector<64x8xf32>
    %c0_3 = arith.constant 0 : index
    %c0_4 = arith.constant 0 : index
    %33 = vector.load %arg8[%c0_3, %c0_4] : memref<10x128xf32, #tpu.memory_space<vmem>>, vector<1x8xf32>
    %34 = vector.broadcast %33 : vector<1x8xf32> to vector<64x8xf32>
    %35 = arith.addf %32, %34 : vector<64x8xf32>
    %cst = arith.constant 0.000000e+00 : f32
    %36 = vector.broadcast %cst : f32 to vector<64x8xf32>
    %37 = arith.maximumf %35, %36 : vector<64x8xf32>
    %38 = arith.truncf %37 : vector<64x8xf32> to vector<64x8xbf16>
    %c0_5 = arith.constant 0 : index
    %c0_6 = arith.constant 0 : index
    %39 = vector.load %arg3[%c0_5, %c0_6] : memref<8x32xbf16, #tpu.memory_space<vmem>>, vector<8x32xbf16>
    %40 = vector.extract_strided_slice %38 {offsets = [0, 0], sizes = [64, 1], strides = [1, 1]} : vector<64x8xbf16> to vector<64x1xbf16>
    %41 = arith.extf %40 : vector<64x1xbf16> to vector<64x1xf32>
    %42 = vector.extract_strided_slice %39 {offsets = [0, 0], sizes = [1, 32], strides = [1, 1]} : vector<8x32xbf16> to vector<1x32xbf16>
    %43 = arith.extf %42 : vector<1x32xbf16> to vector<1x32xf32>
    %44 = vector.broadcast %41 : vector<64x1xf32> to vector<64x32xf32>
    %45 = vector.broadcast %43 : vector<1x32xf32> to vector<64x32xf32>
    %46 = arith.mulf %44, %45 : vector<64x32xf32>
    %47 = vector.extract_strided_slice %38 {offsets = [0, 1], sizes = [64, 1], strides = [1, 1]} : vector<64x8xbf16> to vector<64x1xbf16>
    %48 = arith.extf %47 : vector<64x1xbf16> to vector<64x1xf32>
    %49 = vector.extract_strided_slice %39 {offsets = [1, 0], sizes = [1, 32], strides = [1, 1]} : vector<8x32xbf16> to vector<1x32xbf16>
    %50 = arith.extf %49 : vector<1x32xbf16> to vector<1x32xf32>
    %51 = vector.broadcast %48 : vector<64x1xf32> to vector<64x32xf32>
    %52 = vector.broadcast %50 : vector<1x32xf32> to vector<64x32xf32>
    %53 = arith.mulf %51, %52 : vector<64x32xf32>
    %54 = arith.addf %46, %53 : vector<64x32xf32>
    %55 = vector.extract_strided_slice %38 {offsets = [0, 2], sizes = [64, 1], strides = [1, 1]} : vector<64x8xbf16> to vector<64x1xbf16>
    %56 = arith.extf %55 : vector<64x1xbf16> to vector<64x1xf32>
    %57 = vector.extract_strided_slice %39 {offsets = [2, 0], sizes = [1, 32], strides = [1, 1]} : vector<8x32xbf16> to vector<1x32xbf16>
    %58 = arith.extf %57 : vector<1x32xbf16> to vector<1x32xf32>
    %59 = vector.broadcast %56 : vector<64x1xf32> to vector<64x32xf32>
    %60 = vector.broadcast %58 : vector<1x32xf32> to vector<64x32xf32>
    %61 = arith.mulf %59, %60 : vector<64x32xf32>
    %62 = arith.addf %54, %61 : vector<64x32xf32>
    %63 = vector.extract_strided_slice %38 {offsets = [0, 3], sizes = [64, 1], strides = [1, 1]} : vector<64x8xbf16> to vector<64x1xbf16>
    %64 = arith.extf %63 : vector<64x1xbf16> to vector<64x1xf32>
    %65 = vector.extract_strided_slice %39 {offsets = [3, 0], sizes = [1, 32], strides = [1, 1]} : vector<8x32xbf16> to vector<1x32xbf16>
    %66 = arith.extf %65 : vector<1x32xbf16> to vector<1x32xf32>
    %67 = vector.broadcast %64 : vector<64x1xf32> to vector<64x32xf32>
    %68 = vector.broadcast %66 : vector<1x32xf32> to vector<64x32xf32>
    %69 = arith.mulf %67, %68 : vector<64x32xf32>
    %70 = arith.addf %62, %69 : vector<64x32xf32>
    %71 = vector.extract_strided_slice %38 {offsets = [0, 4], sizes = [64, 1], strides = [1, 1]} : vector<64x8xbf16> to vector<64x1xbf16>
    %72 = arith.extf %71 : vector<64x1xbf16> to vector<64x1xf32>
    %73 = vector.extract_strided_slice %39 {offsets = [4, 0], sizes = [1, 32], strides = [1, 1]} : vector<8x32xbf16> to vector<1x32xbf16>
    %74 = arith.extf %73 : vector<1x32xbf16> to vector<1x32xf32>
    %75 = vector.broadcast %72 : vector<64x1xf32> to vector<64x32xf32>
    %76 = vector.broadcast %74 : vector<1x32xf32> to vector<64x32xf32>
    %77 = arith.mulf %75, %76 : vector<64x32xf32>
    %78 = arith.addf %70, %77 : vector<64x32xf32>
    %79 = vector.extract_strided_slice %38 {offsets = [0, 5], sizes = [64, 1], strides = [1, 1]} : vector<64x8xbf16> to vector<64x1xbf16>
    %80 = arith.extf %79 : vector<64x1xbf16> to vector<64x1xf32>
    %81 = vector.extract_strided_slice %39 {offsets = [5, 0], sizes = [1, 32], strides = [1, 1]} : vector<8x32xbf16> to vector<1x32xbf16>
    %82 = arith.extf %81 : vector<1x32xbf16> to vector<1x32xf32>
    %83 = vector.broadcast %80 : vector<64x1xf32> to vector<64x32xf32>
    %84 = vector.broadcast %82 : vector<1x32xf32> to vector<64x32xf32>
    %85 = arith.mulf %83, %84 : vector<64x32xf32>
    %86 = arith.addf %78, %85 : vector<64x32xf32>
    %87 = vector.extract_strided_slice %38 {offsets = [0, 6], sizes = [64, 1], strides = [1, 1]} : vector<64x8xbf16> to vector<64x1xbf16>
    %88 = arith.extf %87 : vector<64x1xbf16> to vector<64x1xf32>
    %89 = vector.extract_strided_slice %39 {offsets = [6, 0], sizes = [1, 32], strides = [1, 1]} : vector<8x32xbf16> to vector<1x32xbf16>
    %90 = arith.extf %89 : vector<1x32xbf16> to vector<1x32xf32>
    %91 = vector.broadcast %88 : vector<64x1xf32> to vector<64x32xf32>
    %92 = vector.broadcast %90 : vector<1x32xf32> to vector<64x32xf32>
    %93 = arith.mulf %91, %92 : vector<64x32xf32>
    %94 = arith.addf %86, %93 : vector<64x32xf32>
    %95 = vector.extract_strided_slice %38 {offsets = [0, 7], sizes = [64, 1], strides = [1, 1]} : vector<64x8xbf16> to vector<64x1xbf16>
    %96 = arith.extf %95 : vector<64x1xbf16> to vector<64x1xf32>
    %97 = vector.extract_strided_slice %39 {offsets = [7, 0], sizes = [1, 32], strides = [1, 1]} : vector<8x32xbf16> to vector<1x32xbf16>
    %98 = arith.extf %97 : vector<1x32xbf16> to vector<1x32xf32>
    %99 = vector.broadcast %96 : vector<64x1xf32> to vector<64x32xf32>
    %100 = vector.broadcast %98 : vector<1x32xf32> to vector<64x32xf32>
    %101 = arith.mulf %99, %100 : vector<64x32xf32>
    %102 = arith.addf %94, %101 : vector<64x32xf32>
    %c1 = arith.constant 1 : index
    %c0_7 = arith.constant 0 : index
    %103 = vector.load %arg8[%c1, %c0_7] : memref<10x128xf32, #tpu.memory_space<vmem>>, vector<1x32xf32>
    %104 = vector.broadcast %103 : vector<1x32xf32> to vector<64x32xf32>
    %105 = arith.addf %102, %104 : vector<64x32xf32>
    %106 = arith.truncf %105 : vector<64x32xf32> to vector<64x32xbf16>
    %c0_8 = arith.constant 0 : index
    %c0_9 = arith.constant 0 : index
    %107 = vector.load %arg4[%c0_8, %c0_9] : memref<32x128xbf16, #tpu.memory_space<vmem>>, vector<32x128xbf16>
    %cst_10 = arith.constant dense<0.000000e+00> : vector<64x128xf32>
    %108 = tpu.matmul %106, %107, %cst_10 {dimension_numbers = #tpu.dot_dimension_numbers<[1], [0], [0], [1], [0, 0, 1, 1], [], []>} : vector<64x32xbf16>, vector<32x128xbf16>, vector<64x128xf32> -> vector<64x128xf32>
    %109 = vector.extract_strided_slice %108 {offsets = [0, 0], sizes = [64, 32], strides = [1, 1]} : vector<64x128xf32> to vector<64x32xf32>
    %c2 = arith.constant 2 : index
    %c0_11 = arith.constant 0 : index
    %110 = vector.load %arg8[%c2, %c0_11] : memref<10x128xf32, #tpu.memory_space<vmem>>, vector<1x32xf32>
    %111 = vector.broadcast %110 : vector<1x32xf32> to vector<64x32xf32>
    %112 = arith.addf %109, %111 : vector<64x32xf32>
    %113 = vector.shape_cast %112 : vector<64x32xf32> to vector<4x16x32xf32>
    %114 = arith.truncf %113 : vector<4x16x32xf32> to vector<4x16x32xbf16>
    %115 = vector.extract_strided_slice %108 {offsets = [0, 32], sizes = [64, 32], strides = [1, 1]} : vector<64x128xf32> to vector<64x32xf32>
    %c2_12 = arith.constant 2 : index
    %c32 = arith.constant 32 : index
    %116 = vector.load %arg8[%c2_12, %c32] : memref<10x128xf32, #tpu.memory_space<vmem>>, vector<1x32xf32>
    %117 = vector.broadcast %116 : vector<1x32xf32> to vector<64x32xf32>
    %118 = arith.addf %115, %117 : vector<64x32xf32>
    %119 = vector.shape_cast %118 : vector<64x32xf32> to vector<4x16x32xf32>
    %120 = arith.truncf %119 : vector<4x16x32xf32> to vector<4x16x32xbf16>
    %121 = vector.extract_strided_slice %108 {offsets = [0, 64], sizes = [64, 32], strides = [1, 1]} : vector<64x128xf32> to vector<64x32xf32>
    %c2_13 = arith.constant 2 : index
    %c64 = arith.constant 64 : index
    %122 = vector.load %arg8[%c2_13, %c64] : memref<10x128xf32, #tpu.memory_space<vmem>>, vector<1x32xf32>
    %123 = vector.broadcast %122 : vector<1x32xf32> to vector<64x32xf32>
    %124 = arith.addf %121, %123 : vector<64x32xf32>
    %125 = vector.shape_cast %124 : vector<64x32xf32> to vector<4x16x32xf32>
    %126 = arith.truncf %125 : vector<4x16x32xf32> to vector<4x16x32xbf16>
    "tpu.trace_start"() <{level = 10 : i32, message = "bqd,bkd->bqk"}> : () -> ()
    %cst_14 = arith.constant dense<0.000000e+00> : vector<4x16x16xf32>
    %127 = tpu.matmul %114, %120, %cst_14 {dimension_numbers = #tpu.dot_dimension_numbers<[2], [2], [1], [1], [0, 0, 0, 1, 1, 1], [0], [0]>} : vector<4x16x32xbf16>, vector<4x16x32xbf16>, vector<4x16x16xf32> -> vector<4x16x16xf32>
    "tpu.trace_stop"() : () -> ()
    %cst_15 = arith.constant dense<0xFF800000> : vector<4x16xf32>
    %128 = vector.multi_reduction <maximumf>, %127, %cst_15 [2] : vector<4x16x16xf32> to vector<4x16xf32>
    %129 = vector.shape_cast %128 : vector<4x16xf32> to vector<4x16x1xf32>
    %130 = vector.broadcast %129 : vector<4x16x1xf32> to vector<4x16x16xf32>
    %131 = arith.subf %127, %130 : vector<4x16x16xf32>
    %132 = math.exp %131 : vector<4x16x16xf32>
    %cst_16 = arith.constant dense<0.000000e+00> : vector<4x16xf32>
    %133 = vector.multi_reduction <add>, %132, %cst_16 [2] : vector<4x16x16xf32> to vector<4x16xf32>
    %134 = vector.shape_cast %133 : vector<4x16xf32> to vector<4x16x1xf32>
    %135 = tpu.reciprocal %134 {approx = true} : vector<4x16x1xf32> -> vector<4x16x1xf32>
    %136 = vector.broadcast %135 : vector<4x16x1xf32> to vector<4x16x16xf32>
    %137 = arith.mulf %132, %136 : vector<4x16x16xf32>
    %138 = arith.truncf %137 : vector<4x16x16xf32> to vector<4x16x16xbf16>
    "tpu.trace_start"() <{level = 10 : i32, message = "bqk,bkd->bqd"}> : () -> ()
    %cst_17 = arith.constant dense<0.000000e+00> : vector<4x16x32xf32>
    %139 = tpu.matmul %138, %126, %cst_17 {dimension_numbers = #tpu.dot_dimension_numbers<[2], [1], [1], [2], [0, 0, 0, 1, 1, 2], [0], [0]>} : vector<4x16x16xbf16>, vector<4x16x32xbf16>, vector<4x16x32xf32> -> vector<4x16x32xf32>
    "tpu.trace_stop"() : () -> ()
    %140 = vector.shape_cast %139 : vector<4x16x32xf32> to vector<64x32xf32>
    %141 = arith.truncf %140 : vector<64x32xf32> to vector<64x32xbf16>
    %c0_18 = arith.constant 0 : index
    %c0_19 = arith.constant 0 : index
    %142 = vector.load %arg5[%c0_18, %c0_19] : memref<32x32xbf16, #tpu.memory_space<vmem>>, vector<32x32xbf16>
    %cst_20 = arith.constant dense<0.000000e+00> : vector<64x32xf32>
    %143 = tpu.matmul %141, %142, %cst_20 {dimension_numbers = #tpu.dot_dimension_numbers<[1], [0], [0], [1], [0, 0, 1, 1], [], []>} : vector<64x32xbf16>, vector<32x32xbf16>, vector<64x32xf32> -> vector<64x32xf32>
    %c3 = arith.constant 3 : index
    %c0_21 = arith.constant 0 : index
    %144 = vector.load %arg8[%c3, %c0_21] : memref<10x128xf32, #tpu.memory_space<vmem>>, vector<1x32xf32>
    %145 = vector.broadcast %144 : vector<1x32xf32> to vector<64x32xf32>
    %146 = arith.addf %143, %145 : vector<64x32xf32>
    %147 = arith.addf %105, %146 : vector<64x32xf32>
    %c4 = arith.constant 4 : index
    %c0_22 = arith.constant 0 : index
    %148 = vector.load %arg8[%c4, %c0_22] : memref<10x128xf32, #tpu.memory_space<vmem>>, vector<1x32xf32>
    %c5 = arith.constant 5 : index
    %c0_23 = arith.constant 0 : index
    %149 = vector.load %arg8[%c5, %c0_23] : memref<10x128xf32, #tpu.memory_space<vmem>>, vector<1x32xf32>
    %cst_24 = arith.constant dense<0.000000e+00> : vector<64xf32>
    %150 = vector.multi_reduction <add>, %147, %cst_24 [1] : vector<64x32xf32> to vector<64xf32>
    %151 = vector.shape_cast %150 : vector<64xf32> to vector<64x1xf32>
    %cst_25 = arith.constant 3.200000e+01 : f32
    %152 = vector.broadcast %cst_25 : f32 to vector<64x1xf32>
    %153 = arith.divf %151, %152 : vector<64x1xf32>
    %154 = vector.broadcast %153 : vector<64x1xf32> to vector<64x32xf32>
    %155 = arith.subf %147, %154 : vector<64x32xf32>
    %156 = arith.mulf %155, %155 : vector<64x32xf32>
    %cst_26 = arith.constant dense<0.000000e+00> : vector<64xf32>
    %157 = vector.multi_reduction <add>, %156, %cst_26 [1] : vector<64x32xf32> to vector<64xf32>
    %158 = vector.shape_cast %157 : vector<64xf32> to vector<64x1xf32>
    %cst_27 = arith.constant 3.200000e+01 : f32
    %159 = vector.broadcast %cst_27 : f32 to vector<64x1xf32>
    %160 = arith.divf %158, %159 : vector<64x1xf32>
    %161 = vector.broadcast %153 : vector<64x1xf32> to vector<64x32xf32>
    %162 = arith.subf %147, %161 : vector<64x32xf32>
    %cst_28 = arith.constant 9.99999974E-6 : f32
    %163 = vector.broadcast %cst_28 : f32 to vector<64x1xf32>
    %164 = arith.addf %160, %163 : vector<64x1xf32>
    %165 = math.rsqrt %164 : vector<64x1xf32>
    %166 = vector.broadcast %165 : vector<64x1xf32> to vector<64x32xf32>
    %167 = arith.mulf %162, %166 : vector<64x32xf32>
    %168 = vector.broadcast %148 : vector<1x32xf32> to vector<64x32xf32>
    %169 = arith.mulf %167, %168 : vector<64x32xf32>
    %170 = vector.broadcast %149 : vector<1x32xf32> to vector<64x32xf32>
    %171 = arith.addf %169, %170 : vector<64x32xf32>
    %172 = arith.truncf %171 : vector<64x32xf32> to vector<64x32xbf16>
    %c0_29 = arith.constant 0 : index
    %c0_30 = arith.constant 0 : index
    %173 = vector.load %arg6[%c0_29, %c0_30] : memref<32x64xbf16, #tpu.memory_space<vmem>>, vector<32x64xbf16>
    %cst_31 = arith.constant dense<0.000000e+00> : vector<64x64xf32>
    %174 = tpu.matmul %172, %173, %cst_31 {dimension_numbers = #tpu.dot_dimension_numbers<[1], [0], [0], [1], [0, 0, 1, 1], [], []>} : vector<64x32xbf16>, vector<32x64xbf16>, vector<64x64xf32> -> vector<64x64xf32>
    %c6 = arith.constant 6 : index
    %c0_32 = arith.constant 0 : index
    %175 = vector.load %arg8[%c6, %c0_32] : memref<10x128xf32, #tpu.memory_space<vmem>>, vector<1x64xf32>
    %176 = vector.broadcast %175 : vector<1x64xf32> to vector<64x64xf32>
    %177 = arith.addf %174, %176 : vector<64x64xf32>
    %cst_33 = arith.constant 0.000000e+00 : f32
    %178 = vector.broadcast %cst_33 : f32 to vector<64x64xf32>
    %179 = arith.maximumf %177, %178 : vector<64x64xf32>
    %180 = arith.truncf %179 : vector<64x64xf32> to vector<64x64xbf16>
    %c0_34 = arith.constant 0 : index
    %c0_35 = arith.constant 0 : index
    %181 = vector.load %arg7[%c0_34, %c0_35] : memref<64x32xbf16, #tpu.memory_space<vmem>>, vector<64x32xbf16>
    %cst_36 = arith.constant dense<0.000000e+00> : vector<64x32xf32>
    %182 = tpu.matmul %180, %181, %cst_36 {dimension_numbers = #tpu.dot_dimension_numbers<[1], [0], [0], [1], [0, 0, 1, 1], [], []>} : vector<64x64xbf16>, vector<64x32xbf16>, vector<64x32xf32> -> vector<64x32xf32>
    %c7 = arith.constant 7 : index
    %c0_37 = arith.constant 0 : index
    %183 = vector.load %arg8[%c7, %c0_37] : memref<10x128xf32, #tpu.memory_space<vmem>>, vector<1x32xf32>
    %184 = vector.broadcast %183 : vector<1x32xf32> to vector<64x32xf32>
    %185 = arith.addf %182, %184 : vector<64x32xf32>
    %186 = arith.addf %171, %185 : vector<64x32xf32>
    %c8 = arith.constant 8 : index
    %c0_38 = arith.constant 0 : index
    %187 = vector.load %arg8[%c8, %c0_38] : memref<10x128xf32, #tpu.memory_space<vmem>>, vector<1x32xf32>
    %c9 = arith.constant 9 : index
    %c0_39 = arith.constant 0 : index
    %188 = vector.load %arg8[%c9, %c0_39] : memref<10x128xf32, #tpu.memory_space<vmem>>, vector<1x32xf32>
    %cst_40 = arith.constant dense<0.000000e+00> : vector<64xf32>
    %189 = vector.multi_reduction <add>, %186, %cst_40 [1] : vector<64x32xf32> to vector<64xf32>
    %190 = vector.shape_cast %189 : vector<64xf32> to vector<64x1xf32>
    %cst_41 = arith.constant 3.200000e+01 : f32
    %191 = vector.broadcast %cst_41 : f32 to vector<64x1xf32>
    %192 = arith.divf %190, %191 : vector<64x1xf32>
    %193 = vector.broadcast %192 : vector<64x1xf32> to vector<64x32xf32>
    %194 = arith.subf %186, %193 : vector<64x32xf32>
    %195 = arith.mulf %194, %194 : vector<64x32xf32>
    %cst_42 = arith.constant dense<0.000000e+00> : vector<64xf32>
    %196 = vector.multi_reduction <add>, %195, %cst_42 [1] : vector<64x32xf32> to vector<64xf32>
    %197 = vector.shape_cast %196 : vector<64xf32> to vector<64x1xf32>
    %cst_43 = arith.constant 3.200000e+01 : f32
    %198 = vector.broadcast %cst_43 : f32 to vector<64x1xf32>
    %199 = arith.divf %197, %198 : vector<64x1xf32>
    %200 = vector.broadcast %192 : vector<64x1xf32> to vector<64x32xf32>
    %201 = arith.subf %186, %200 : vector<64x32xf32>
    %cst_44 = arith.constant 9.99999974E-6 : f32
    %202 = vector.broadcast %cst_44 : f32 to vector<64x1xf32>
    %203 = arith.addf %199, %202 : vector<64x1xf32>
    %204 = math.rsqrt %203 : vector<64x1xf32>
    %205 = vector.broadcast %204 : vector<64x1xf32> to vector<64x32xf32>
    %206 = arith.mulf %201, %205 : vector<64x32xf32>
    %207 = vector.broadcast %187 : vector<1x32xf32> to vector<64x32xf32>
    %208 = arith.mulf %206, %207 : vector<64x32xf32>
    %209 = vector.broadcast %188 : vector<1x32xf32> to vector<64x32xf32>
    %210 = arith.addf %208, %209 : vector<64x32xf32>
    %c0_45 = arith.constant 0 : index
    %c0_46 = arith.constant 0 : index
    %211 = vector.load %arg9[%c0_45, %c0_46] : memref<64x32xf32, #tpu.memory_space<vmem>>, vector<64x32xf32>
    tpu.vector_store %arg9[%c0_45, %c0_46], %210 {strides = array<i32>} : memref<64x32xf32, #tpu.memory_space<vmem>>, vector<64x32xf32>,
    return
  }
  func.func @transform_0(%arg0: i32) -> (i32, i32) {
    %c0_i32 = arith.constant 0 : i32
    %c0_i32_0 = arith.constant 0 : i32
    return %arg0, %c0_i32 : i32, i32
  }
  func.func @transform_1(%arg0: i32) -> (i32, i32) {
    %c0_i32 = arith.constant 0 : i32
    %c0_i32_0 = arith.constant 0 : i32
    %c0_i32_1 = arith.constant 0 : i32
    return %c0_i32, %c0_i32_0 : i32, i32
  }
  func.func @transform_2(%arg0: i32) -> (i32, i32) {
    %c0_i32 = arith.constant 0 : i32
    %c0_i32_0 = arith.constant 0 : i32
    %c0_i32_1 = arith.constant 0 : i32
    return %c0_i32, %c0_i32_0 : i32, i32
  }
  func.func @transform_3(%arg0: i32) -> (i32, i32) {
    %c0_i32 = arith.constant 0 : i32
    %c0_i32_0 = arith.constant 0 : i32
    %c0_i32_1 = arith.constant 0 : i32
    return %c0_i32, %c0_i32_0 : i32, i32
  }
  func.func @transform_4(%arg0: i32) -> (i32, i32) {
    %c0_i32 = arith.constant 0 : i32
    %c0_i32_0 = arith.constant 0 : i32
    %c0_i32_1 = arith.constant 0 : i32
    return %c0_i32, %c0_i32_0 : i32, i32
  }
  func.func @transform_5(%arg0: i32) -> (i32, i32) {
    %c0_i32 = arith.constant 0 : i32
    %c0_i32_0 = arith.constant 0 : i32
    %c0_i32_1 = arith.constant 0 : i32
    return %c0_i32, %c0_i32_0 : i32, i32
  }
  func.func @transform_6(%arg0: i32) -> (i32, i32) {
    %c0_i32 = arith.constant 0 : i32
    %c0_i32_0 = arith.constant 0 : i32
    %c0_i32_1 = arith.constant 0 : i32
    return %c0_i32, %c0_i32_0 : i32, i32
  }
  func.func @transform_7(%arg0: i32) -> (i32, i32) {
    %c0_i32 = arith.constant 0 : i32
    %c0_i32_0 = arith.constant 0 : i32
    %c0_i32_1 = arith.constant 0 : i32
    return %c0_i32, %c0_i32_0 : i32, i32
  }
  func.func @transform_8(%arg0: i32) -> (i32, i32) {
    %c0_i32 = arith.constant 0 : i32
    %c0_i32_0 = arith.constant 0 : i32
    return %arg0, %c0_i32 : i32, i32
  }
}

</mosaic_0001>

<llo_original>
// kernel: tranmodel_forward.1
$region0: #{tranmodel_forward.1}
  #allocation0 [shape = 'u32[]', space=smem, size = 0x4, offset = 0x4, fixed_abs, tag = 'smem constant byte address 0x4 - core index']
  #allocation1 [shape = 'u32[144,128]{1,0:T(1,128)}', space=vmem, size = 0x12000, scoped, tag = 'internal scratch']
  %s0 = inlined_call_operand.vmem [shape: bf16[64,4], index: 0, kind: input, shape index: {}]
  %s1 = inlined_call_operand.vmem [shape: bf16[4,8], index: 1, kind: input, shape index: {}]
  %s2 = inlined_call_operand.vmem [shape: bf16[8,32], index: 2, kind: input, shape index: {}]
  %s3 = inlined_call_operand.vmem [shape: bf16[32,128], index: 3, kind: input, shape index: {}]
  %s4 = inlined_call_operand.vmem [shape: bf16[32,32], index: 4, kind: input, shape index: {}]
  %s5 = inlined_call_operand.vmem [shape: bf16[32,64], index: 5, kind: input, shape index: {}]
  %s6 = inlined_call_operand.vmem [shape: bf16[64,32], index: 6, kind: input, shape index: {}]
  %s7 = inlined_call_operand.vmem [shape: f32[10,128], index: 7, kind: input, shape index: {}]
  %s8 = inlined_call_operand.hbm [shape: f32[64,32], index: 8, kind: output, shape index: {}]
  %s9 = sld [smem:[#allocation0]]
  $region42: #{tranmodel_forward.1} parent=0
    _
  %s11 = ssub.s32 1, %s9
  %s12 = scalar_select 0, %s11, %s9
  $region1: #{tranmodel_forward.1} parent=0
    #allocation2 [shape = 'u8[32768]{0}', space=vmem, size = 0x8000, scoped, tag = 'output window, operand 0, single buffered']
    #allocation3 [shape = 's32[1]{0}', space=sflag, size = 0x4, scoped, tag = 'scoped memory for tranmodel_forward.1']
    %13 = vsyncpa [#allocation3], 0
    // Predicated region
    $region2: #{tranmodel_forward.1} parent=1 // pred_check
      _
    $region3: #{tranmodel_forward.1} parent=1 // pred_check_branch
      %15 = sbr.rel (0) target = $region5
    $region4: #{tranmodel_forward.1} parent=1 // pred_region
      _
    $region5: #{tranmodel_forward.1} parent=1 // pred_fallthru
      _
    // Predicated region
    $region6: #{tranmodel_forward.1} parent=1 // pred_check
      _
    $region7: #{tranmodel_forward.1} parent=1 // pred_check_branch
      %17 = sbr.rel (0) target = $region9
    $region8: #{tranmodel_forward.1} parent=1 // pred_region
      _
    $region9: #{tranmodel_forward.1} parent=1 // pred_fallthru
      _
    // Predicated region
    $region10: #{tranmodel_forward.1} parent=1 // pred_check
      _
    $region11: #{tranmodel_forward.1} parent=1 // pred_check_branch
      %19 = sbr.rel (0) target = $region13
    $region12: #{tranmodel_forward.1} parent=1 // pred_region
      _
    $region13: #{tranmodel_forward.1} parent=1 // pred_fallthru
      _
    // Predicated region
    $region14: #{tranmodel_forward.1} parent=1 // pred_check
      _
    $region15: #{tranmodel_forward.1} parent=1 // pred_check_branch
      %21 = sbr.rel (0) target = $region17
    $region16: #{tranmodel_forward.1} parent=1 // pred_region
      _
    $region17: #{tranmodel_forward.1} parent=1 // pred_fallthru
      _
    // Predicated region
    $region18: #{tranmodel_forward.1} parent=1 // pred_check
      _
    $region19: #{tranmodel_forward.1} parent=1 // pred_check_branch
      %23 = sbr.rel (0) target = $region21
    $region20: #{tranmodel_forward.1} parent=1 // pred_region
      _
    $region21: #{tranmodel_forward.1} parent=1 // pred_fallthru
      _
    // Predicated region
    $region22: #{tranmodel_forward.1} parent=1 // pred_check
      _
    $region23: #{tranmodel_forward.1} parent=1 // pred_check_branch
      %25 = sbr.rel (0) target = $region25
    $region24: #{tranmodel_forward.1} parent=1 // pred_region
      _
    $region25: #{tranmodel_forward.1} parent=1 // pred_fallthru
      _
    // Predicated region
    $region26: #{tranmodel_forward.1} parent=1 // pred_check
      _
    $region27: #{tranmodel_forward.1} parent=1 // pred_check_branch
      %27 = sbr.rel (0) target = $region29
    $region28: #{tranmodel_forward.1} parent=1 // pred_region
      _
    $region29: #{tranmodel_forward.1} parent=1 // pred_fallthru
      _
    // Predicated region
    $region30: #{tranmodel_forward.1} parent=1 // pred_check
      _
    $region31: #{tranmodel_forward.1} parent=1 // pred_check_branch
      %29 = sbr.rel (0) target = $region33
    $region32: #{tranmodel_forward.1} parent=1 // pred_region
      _
    $region33: #{tranmodel_forward.1} parent=1 // pred_fallthru
      _
    %v31 = vld [vmem:[%s0] sm:$0xf]
    %v32 = vld [vmem:[%s0 + $0x4] sm:$0xf]
    %v33 = vld [vmem:[%s0 + $0x8] sm:$0xf]
    %v34 = vld [vmem:[%s0 + $0xc] sm:$0xf]
    %v35 = vld [vmem:[%s0 + $0x10] sm:$0xf]
    %v36 = vld [vmem:[%s0 + $0x14] sm:$0xf]
    %v37 = vld [vmem:[%s0 + $0x18] sm:$0xf]
    %v38 = vld [vmem:[%s0 + $0x1c] sm:$0xf]
    %v39 = vld [vmem:[%s1] sm:$0x3]
    %v40 = vunpack.c.l.bf16 %v31
    %v41 = vunpack.c.l.bf16 %v32
    %v42 = vunpack.c.l.bf16 %v33
    %v43 = vunpack.c.l.bf16 %v34
    %v44 = vunpack.c.l.bf16 %v35
    %v45 = vunpack.c.l.bf16 %v36
    %v46 = vunpack.c.l.bf16 %v37
    %v47 = vunpack.c.l.bf16 %v38
    %v48 = vunpack.c.l.bf16 %v39
    %50 = vset.pattern.permute.xlu0 0
    %51 = vperm.xlu0 %50, %v40
    %v52 = vpop.permute.xlu0 %51
    %55 = vset.pattern.permute.xlu0 0
    %56 = vperm.xlu0 %55, %v41
    %v57 = vpop.permute.xlu0 %56
    %60 = vset.pattern.permute.xlu0 0
    %61 = vperm.xlu0 %60, %v42
    %v62 = vpop.permute.xlu0 %61
    %65 = vset.pattern.permute.xlu0 0
    %66 = vperm.xlu0 %65, %v43
    %v67 = vpop.permute.xlu0 %66
    %70 = vset.pattern.permute.xlu0 0
    %71 = vperm.xlu0 %70, %v44
    %v72 = vpop.permute.xlu0 %71
    %75 = vset.pattern.permute.xlu0 0
    %76 = vperm.xlu0 %75, %v45
    %v77 = vpop.permute.xlu0 %76
    %80 = vset.pattern.permute.xlu0 0
    %81 = vperm.xlu0 %80, %v46
    %v82 = vpop.permute.xlu0 %81
    %85 = vset.pattern.permute.xlu0 0
    %86 = vperm.xlu0 %85, %v47
    %v87 = vpop.permute.xlu0 %86
    %v89 = vlaneseq
    %v90 = vshrl.u32 %v89, 7
    %v91 = vsub.s32 0, %v90
    %v92 = vrot.slane %v48, %v91
    %v93 = vmul.f32 %v52, %v92
    %v94 = vmul.f32 %v57, %v92
    %v95 = vmul.f32 %v62, %v92
    %v96 = vmul.f32 %v67, %v92
    %v97 = vmul.f32 %v72, %v92
    %v98 = vmul.f32 %v77, %v92
    %v99 = vmul.f32 %v82, %v92
    %v100 = vmul.f32 %v87, %v92
    %101 = vset.pattern.permute.xlu0 1
    %102 = vperm.xlu0 %101, %v40
    %v103 = vpop.permute.xlu0 %102
    %105 = vset.pattern.permute.xlu0 1
    %106 = vperm.xlu0 %105, %v41
    %v107 = vpop.permute.xlu0 %106
    %109 = vset.pattern.permute.xlu0 1
    %110 = vperm.xlu0 %109, %v42
    %v111 = vpop.permute.xlu0 %110
    %113 = vset.pattern.permute.xlu0 1
    %114 = vperm.xlu0 %113, %v43
    %v115 = vpop.permute.xlu0 %114
    %117 = vset.pattern.permute.xlu0 1
    %118 = vperm.xlu0 %117, %v44
    %v119 = vpop.permute.xlu0 %118
    %121 = vset.pattern.permute.xlu0 1
    %122 = vperm.xlu0 %121, %v45
    %v123 = vpop.permute.xlu0 %122
    %125 = vset.pattern.permute.xlu0 1
    %126 = vperm.xlu0 %125, %v46
    %v127 = vpop.permute.xlu0 %126
    %129 = vset.pattern.permute.xlu0 1
    %130 = vperm.xlu0 %129, %v47
    %v131 = vpop.permute.xlu0 %130
    %v133 = vlaneseq
    %v134 = vshrl.u32 %v133, 7
    %v135 = vsub.s32 1, %v134
    %v136 = vrot.slane %v48, %v135
    %v137 = vmul.f32 %v103, %v136
    %v138 = vmul.f32 %v107, %v136
    %v139 = vmul.f32 %v111, %v136
    %v140 = vmul.f32 %v115, %v136
    %v141 = vmul.f32 %v119, %v136
    %v142 = vmul.f32 %v123, %v136
    %v143 = vmul.f32 %v127, %v136
    %v144 = vmul.f32 %v131, %v136
    %v145 = vadd.f32 %v93, %v137
    %v146 = vadd.f32 %v94, %v138
    %v147 = vadd.f32 %v95, %v139
    %v148 = vadd.f32 %v96, %v140
    %v149 = vadd.f32 %v97, %v141
    %v150 = vadd.f32 %v98, %v142
    %v151 = vadd.f32 %v99, %v143
    %v152 = vadd.f32 %v100, %v144
    %153 = vset.pattern.permute.xlu0 2
    %154 = vperm.xlu0 %153, %v40
    %v155 = vpop.permute.xlu0 %154
    %157 = vset.pattern.permute.xlu0 2
    %158 = vperm.xlu0 %157, %v41
    %v159 = vpop.permute.xlu0 %158
    %161 = vset.pattern.permute.xlu0 2
    %162 = vperm.xlu0 %161, %v42
    %v163 = vpop.permute.xlu0 %162
    %165 = vset.pattern.permute.xlu0 2
    %166 = vperm.xlu0 %165, %v43
    %v167 = vpop.permute.xlu0 %166
    %169 = vset.pattern.permute.xlu0 2
    %170 = vperm.xlu0 %169, %v44
    %v171 = vpop.permute.xlu0 %170
    %173 = vset.pattern.permute.xlu0 2
    %174 = vperm.xlu0 %173, %v45
    %v175 = vpop.permute.xlu0 %174
    %177 = vset.pattern.permute.xlu0 2
    %178 = vperm.xlu0 %177, %v46
    %v179 = vpop.permute.xlu0 %178
    %181 = vset.pattern.permute.xlu0 2
    %182 = vperm.xlu0 %181, %v47
    %v183 = vpop.permute.xlu0 %182
    %v185 = vlaneseq
    %v186 = vshrl.u32 %v185, 7
    %v187 = vsub.s32 2, %v186
    %v188 = vrot.slane %v48, %v187
    %v189 = vmul.f32 %v155, %v188
    %v190 = vmul.f32 %v159, %v188
    %v191 = vmul.f32 %v163, %v188
    %v192 = vmul.f32 %v167, %v188
    %v193 = vmul.f32 %v171, %v188
    %v194 = vmul.f32 %v175, %v188
    %v195 = vmul.f32 %v179, %v188
    %v196 = vmul.f32 %v183, %v188
    %v197 = vadd.f32 %v145, %v189
    %v198 = vadd.f32 %v146, %v190
    %v199 = vadd.f32 %v147, %v191
    %v200 = vadd.f32 %v148, %v192
    %v201 = vadd.f32 %v149, %v193
    %v202 = vadd.f32 %v150, %v194
    %v203 = vadd.f32 %v151, %v195
    %v204 = vadd.f32 %v152, %v196
    %205 = vset.pattern.permute.xlu0 3
    %206 = vperm.xlu0 %205, %v40
    %v207 = vpop.permute.xlu0 %206
    %209 = vset.pattern.permute.xlu0 3
    %210 = vperm.xlu0 %209, %v41
    %v211 = vpop.permute.xlu0 %210
    %213 = vset.pattern.permute.xlu0 3
    %214 = vperm.xlu0 %213, %v42
    %v215 = vpop.permute.xlu0 %214
    %217 = vset.pattern.permute.xlu0 3
    %218 = vperm.xlu0 %217, %v43
    %v219 = vpop.permute.xlu0 %218
    %221 = vset.pattern.permute.xlu0 3
    %222 = vperm.xlu0 %221, %v44
    %v223 = vpop.permute.xlu0 %222
    %225 = vset.pattern.permute.xlu0 3
    %226 = vperm.xlu0 %225, %v45
    %v227 = vpop.permute.xlu0 %226
    %229 = vset.pattern.permute.xlu0 3
    %230 = vperm.xlu0 %229, %v46
    %v231 = vpop.permute.xlu0 %230
    %233 = vset.pattern.permute.xlu0 3
    %234 = vperm.xlu0 %233, %v47
    %v235 = vpop.permute.xlu0 %234
    %v237 = vlaneseq
    %v238 = vshrl.u32 %v237, 7
    %v239 = vsub.s32 3, %v238
    %v240 = vrot.slane %v48, %v239
    %v241 = vmul.f32 %v207, %v240
    %v242 = vmul.f32 %v211, %v240
    %v243 = vmul.f32 %v215, %v240
    %v244 = vmul.f32 %v219, %v240
    %v245 = vmul.f32 %v223, %v240
    %v246 = vmul.f32 %v227, %v240
    %v247 = vmul.f32 %v231, %v240
    %v248 = vmul.f32 %v235, %v240
    %v249 = vadd.f32 %v197, %v241
    %v250 = vadd.f32 %v198, %v242
    %v251 = vadd.f32 %v199, %v243
    %v252 = vadd.f32 %v200, %v244
    %v253 = vadd.f32 %v201, %v245
    %v254 = vadd.f32 %v202, %v246
    %v255 = vadd.f32 %v203, %v247
    %v256 = vadd.f32 %v204, %v248
    %v257 = vld [vmem:[%s7] sm:$0x1]
    %v258 = vlaneseq
    %v259 = vshrl.u32 %v258, 7
    %v260 = vsub.s32 0, %v259
    %v261 = vrot.slane %v257, %v260
    %v262 = vadd.f32 %v249, %v261
    %v263 = vadd.f32 %v250, %v261
    %v264 = vadd.f32 %v251, %v261
    %v265 = vadd.f32 %v252, %v261
    %v266 = vadd.f32 %v253, %v261
    %v267 = vadd.f32 %v254, %v261
    %v268 = vadd.f32 %v255, %v261
    %v269 = vadd.f32 %v256, %v261
    %v270 = vmax.f32 %v262, 0.0
    %v271 = vmax.f32 %v263, 0.0
    %v272 = vmax.f32 %v264, 0.0
    %v273 = vmax.f32 %v265, 0.0
    %v274 = vmax.f32 %v266, 0.0
    %v275 = vmax.f32 %v267, 0.0
    %v276 = vmax.f32 %v268, 0.0
    %v277 = vmax.f32 %v269, 0.0
    %v278 = vpack.c.bf16 %v271, %v270
    %v279 = vpack.c.bf16 %v273, %v272
    %v280 = vpack.c.bf16 %v275, %v274
    %v281 = vpack.c.bf16 %v277, %v276
    %v282 = vld [vmem:[%s2] sm:$0xf]
    %v283 = vunpack.c.l.bf16 %v278
    %v284 = vunpack.c.h.bf16 %v278
    %v285 = vunpack.c.l.bf16 %v279
    %v286 = vunpack.c.h.bf16 %v279
    %v287 = vunpack.c.l.bf16 %v280
    %v288 = vunpack.c.h.bf16 %v280
    %v289 = vunpack.c.l.bf16 %v281
    %v290 = vunpack.c.h.bf16 %v281
    %v291 = vunpack.c.l.bf16 %v282
    %293 = vset.pattern.permute.xlu0 0
    %294 = vperm.xlu0 %293, %v283
    %v295 = vpop.permute.xlu0 %294
    %298 = vset.pattern.permute.xlu0 0
    %299 = vperm.xlu0 %298, %v284
    %v300 = vpop.permute.xlu0 %299
    %303 = vset.pattern.permute.xlu0 0
    %304 = vperm.xlu0 %303, %v285
    %v305 = vpop.permute.xlu0 %304
    %308 = vset.pattern.permute.xlu0 0
    %309 = vperm.xlu0 %308, %v286
    %v310 = vpop.permute.xlu0 %309
    %313 = vset.pattern.permute.xlu0 0
    %314 = vperm.xlu0 %313, %v287
    %v315 = vpop.permute.xlu0 %314
    %318 = vset.pattern.permute.xlu0 0
    %319 = vperm.xlu0 %318, %v288
    %v320 = vpop.permute.xlu0 %319
    %323 = vset.pattern.permute.xlu0 0
    %324 = vperm.xlu0 %323, %v289
    %v325 = vpop.permute.xlu0 %324
    %328 = vset.pattern.permute.xlu0 0
    %329 = vperm.xlu0 %328, %v290
    %v330 = vpop.permute.xlu0 %329
    %v332 = vlaneseq
    %v333 = vshrl.u32 %v332, 7
    %v334 = vsub.s32 0, %v333
    %v335 = vrot.slane %v291, %v334
    %v336 = vmul.f32 %v295, %v335
    %v337 = vmul.f32 %v300, %v335
    %v338 = vmul.f32 %v305, %v335
    %v339 = vmul.f32 %v310, %v335
    %v340 = vmul.f32 %v315, %v335
    %v341 = vmul.f32 %v320, %v335
    %v342 = vmul.f32 %v325, %v335
    %v343 = vmul.f32 %v330, %v335
    %344 = vset.pattern.permute.xlu0 1
    %345 = vperm.xlu0 %344, %v283
    %v346 = vpop.permute.xlu0 %345
    %348 = vset.pattern.permute.xlu0 1
    %349 = vperm.xlu0 %348, %v284
    %v350 = vpop.permute.xlu0 %349
    %352 = vset.pattern.permute.xlu0 1
    %353 = vperm.xlu0 %352, %v285
    %v354 = vpop.permute.xlu0 %353
    %356 = vset.pattern.permute.xlu0 1
    %357 = vperm.xlu0 %356, %v286
    %v358 = vpop.permute.xlu0 %357
    %360 = vset.pattern.permute.xlu0 1
    %361 = vperm.xlu0 %360, %v287
    %v362 = vpop.permute.xlu0 %361
    %364 = vset.pattern.permute.xlu0 1
    %365 = vperm.xlu0 %364, %v288
    %v366 = vpop.permute.xlu0 %365
    %368 = vset.pattern.permute.xlu0 1
    %369 = vperm.xlu0 %368, %v289
    %v370 = vpop.permute.xlu0 %369
    %372 = vset.pattern.permute.xlu0 1
    %373 = vperm.xlu0 %372, %v290
    %v374 = vpop.permute.xlu0 %373
    %v376 = vlaneseq
    %v377 = vshrl.u32 %v376, 7
    %v378 = vsub.s32 1, %v377
    %v379 = vrot.slane %v291, %v378
    %v380 = vmul.f32 %v346, %v379
    %v381 = vmul.f32 %v350, %v379
    %v382 = vmul.f32 %v354, %v379
    %v383 = vmul.f32 %v358, %v379
    %v384 = vmul.f32 %v362, %v379
    %v385 = vmul.f32 %v366, %v379
    %v386 = vmul.f32 %v370, %v379
    %v387 = vmul.f32 %v374, %v379
    %v388 = vadd.f32 %v336, %v380
    %v389 = vadd.f32 %v337, %v381
    %v390 = vadd.f32 %v338, %v382
    %v391 = vadd.f32 %v339, %v383
    %v392 = vadd.f32 %v340, %v384
    %v393 = vadd.f32 %v341, %v385
    %v394 = vadd.f32 %v342, %v386
    %v395 = vadd.f32 %v343, %v387
    %396 = vset.pattern.permute.xlu0 2
    %397 = vperm.xlu0 %396, %v283
    %v398 = vpop.permute.xlu0 %397
    %400 = vset.pattern.permute.xlu0 2
    %401 = vperm.xlu0 %400, %v284
    %v402 = vpop.permute.xlu0 %401
    %404 = vset.pattern.permute.xlu0 2
    %405 = vperm.xlu0 %404, %v285
    %v406 = vpop.permute.xlu0 %405
    %408 = vset.pattern.permute.xlu0 2
    %409 = vperm.xlu0 %408, %v286
    %v410 = vpop.permute.xlu0 %409
    %412 = vset.pattern.permute.xlu0 2
    %413 = vperm.xlu0 %412, %v287
    %v414 = vpop.permute.xlu0 %413
    %416 = vset.pattern.permute.xlu0 2
    %417 = vperm.xlu0 %416, %v288
    %v418 = vpop.permute.xlu0 %417
    %420 = vset.pattern.permute.xlu0 2
    %421 = vperm.xlu0 %420, %v289
    %v422 = vpop.permute.xlu0 %421
    %424 = vset.pattern.permute.xlu0 2
    %425 = vperm.xlu0 %424, %v290
    %v426 = vpop.permute.xlu0 %425
    %v428 = vlaneseq
    %v429 = vshrl.u32 %v428, 7
    %v430 = vsub.s32 2, %v429
    %v431 = vrot.slane %v291, %v430
    %v432 = vmul.f32 %v398, %v431
    %v433 = vmul.f32 %v402, %v431
    %v434 = vmul.f32 %v406, %v431
    %v435 = vmul.f32 %v410, %v431
    %v436 = vmul.f32 %v414, %v431
    %v437 = vmul.f32 %v418, %v431
    %v438 = vmul.f32 %v422, %v431
    %v439 = vmul.f32 %v426, %v431
    %v440 = vadd.f32 %v388, %v432
    %v441 = vadd.f32 %v389, %v433
    %v442 = vadd.f32 %v390, %v434
    %v443 = vadd.f32 %v391, %v435
    %v444 = vadd.f32 %v392, %v436
    %v445 = vadd.f32 %v393, %v437
    %v446 = vadd.f32 %v394, %v438
    %v447 = vadd.f32 %v395, %v439
    %448 = vset.pattern.permute.xlu0 3
    %449 = vperm.xlu0 %448, %v283
    %v450 = vpop.permute.xlu0 %449
    %452 = vset.pattern.permute.xlu0 3
    %453 = vperm.xlu0 %452, %v284
    %v454 = vpop.permute.xlu0 %453
    %456 = vset.pattern.permute.xlu0 3
    %457 = vperm.xlu0 %456, %v285
    %v458 = vpop.permute.xlu0 %457
    %460 = vset.pattern.permute.xlu0 3
    %461 = vperm.xlu0 %460, %v286
    %v462 = vpop.permute.xlu0 %461
    %464 = vset.pattern.permute.xlu0 3
    %465 = vperm.xlu0 %464, %v287
    %v466 = vpop.permute.xlu0 %465
    %468 = vset.pattern.permute.xlu0 3
    %469 = vperm.xlu0 %468, %v288
    %v470 = vpop.permute.xlu0 %469
    %472 = vset.pattern.permute.xlu0 3
    %473 = vperm.xlu0 %472, %v289
    %v474 = vpop.permute.xlu0 %473
    %476 = vset.pattern.permute.xlu0 3
    %477 = vperm.xlu0 %476, %v290
    %v478 = vpop.permute.xlu0 %477
    %v480 = vlaneseq
    %v481 = vshrl.u32 %v480, 7
    %v482 = vsub.s32 3, %v481
    %v483 = vrot.slane %v291, %v482
    %v484 = vmul.f32 %v450, %v483
    %v485 = vmul.f32 %v454, %v483
    %v486 = vmul.f32 %v458, %v483
    %v487 = vmul.f32 %v462, %v483
    %v488 = vmul.f32 %v466, %v483
    %v489 = vmul.f32 %v470, %v483
    %v490 = vmul.f32 %v474, %v483
    %v491 = vmul.f32 %v478, %v483
    %v492 = vadd.f32 %v440, %v484
    %v493 = vadd.f32 %v441, %v485
    %v494 = vadd.f32 %v442, %v486
    %v495 = vadd.f32 %v443, %v487
    %v496 = vadd.f32 %v444, %v488
    %v497 = vadd.f32 %v445, %v489
    %v498 = vadd.f32 %v446, %v490
    %v499 = vadd.f32 %v447, %v491
    %500 = vset.pattern.permute.xlu0 4
    %501 = vperm.xlu0 %500, %v283
    %v502 = vpop.permute.xlu0 %501
    %504 = vset.pattern.permute.xlu0 4
    %505 = vperm.xlu0 %504, %v284
    %v506 = vpop.permute.xlu0 %505
    %508 = vset.pattern.permute.xlu0 4
    %509 = vperm.xlu0 %508, %v285
    %v510 = vpop.permute.xlu0 %509
    %512 = vset.pattern.permute.xlu0 4
    %513 = vperm.xlu0 %512, %v286
    %v514 = vpop.permute.xlu0 %513
    %516 = vset.pattern.permute.xlu0 4
    %517 = vperm.xlu0 %516, %v287
    %v518 = vpop.permute.xlu0 %517
    %520 = vset.pattern.permute.xlu0 4
    %521 = vperm.xlu0 %520, %v288
    %v522 = vpop.permute.xlu0 %521
    %524 = vset.pattern.permute.xlu0 4
    %525 = vperm.xlu0 %524, %v289
    %v526 = vpop.permute.xlu0 %525
    %528 = vset.pattern.permute.xlu0 4
    %529 = vperm.xlu0 %528, %v290
    %v530 = vpop.permute.xlu0 %529
    %v532 = vlaneseq
    %v533 = vshrl.u32 %v532, 7
    %v534 = vsub.s32 4, %v533
    %v535 = vrot.slane %v291, %v534
    %v536 = vmul.f32 %v502, %v535
    %v537 = vmul.f32 %v506, %v535
    %v538 = vmul.f32 %v510, %v535
    %v539 = vmul.f32 %v514, %v535
    %v540 = vmul.f32 %v518, %v535
    %v541 = vmul.f32 %v522, %v535
    %v542 = vmul.f32 %v526, %v535
    %v543 = vmul.f32 %v530, %v535
    %v544 = vadd.f32 %v492, %v536
    %v545 = vadd.f32 %v493, %v537
    %v546 = vadd.f32 %v494, %v538
    %v547 = vadd.f32 %v495, %v539
    %v548 = vadd.f32 %v496, %v540
    %v549 = vadd.f32 %v497, %v541
    %v550 = vadd.f32 %v498, %v542
    %v551 = vadd.f32 %v499, %v543
    %552 = vset.pattern.permute.xlu0 5
    %553 = vperm.xlu0 %552, %v283
    %v554 = vpop.permute.xlu0 %553
    %556 = vset.pattern.permute.xlu0 5
    %557 = vperm.xlu0 %556, %v284
    %v558 = vpop.permute.xlu0 %557
    %560 = vset.pattern.permute.xlu0 5
    %561 = vperm.xlu0 %560, %v285
    %v562 = vpop.permute.xlu0 %561
    %564 = vset.pattern.permute.xlu0 5
    %565 = vperm.xlu0 %564, %v286
    %v566 = vpop.permute.xlu0 %565
    %568 = vset.pattern.permute.xlu0 5
    %569 = vperm.xlu0 %568, %v287
    %v570 = vpop.permute.xlu0 %569
    %572 = vset.pattern.permute.xlu0 5
    %573 = vperm.xlu0 %572, %v288
    %v574 = vpop.permute.xlu0 %573
    %576 = vset.pattern.permute.xlu0 5
    %577 = vperm.xlu0 %576, %v289
    %v578 = vpop.permute.xlu0 %577
    %580 = vset.pattern.permute.xlu0 5
    %581 = vperm.xlu0 %580, %v290
    %v582 = vpop.permute.xlu0 %581
    %v584 = vlaneseq
    %v585 = vshrl.u32 %v584, 7
    %v586 = vsub.s32 5, %v585
    %v587 = vrot.slane %v291, %v586
    %v588 = vmul.f32 %v554, %v587
    %v589 = vmul.f32 %v558, %v587
    %v590 = vmul.f32 %v562, %v587
    %v591 = vmul.f32 %v566, %v587
    %v592 = vmul.f32 %v570, %v587
    %v593 = vmul.f32 %v574, %v587
    %v594 = vmul.f32 %v578, %v587
    %v595 = vmul.f32 %v582, %v587
    %v596 = vadd.f32 %v544, %v588
    %v597 = vadd.f32 %v545, %v589
    %v598 = vadd.f32 %v546, %v590
    %v599 = vadd.f32 %v547, %v591
    %v600 = vadd.f32 %v548, %v592
    %v601 = vadd.f32 %v549, %v593
    %v602 = vadd.f32 %v550, %v594
    %v603 = vadd.f32 %v551, %v595
    %604 = vset.pattern.permute.xlu0 6
    %605 = vperm.xlu0 %604, %v283
    %v606 = vpop.permute.xlu0 %605
    %608 = vset.pattern.permute.xlu0 6
    %609 = vperm.xlu0 %608, %v284
    %v610 = vpop.permute.xlu0 %609
    %612 = vset.pattern.permute.xlu0 6
    %613 = vperm.xlu0 %612, %v285
    %v614 = vpop.permute.xlu0 %613
    %616 = vset.pattern.permute.xlu0 6
    %617 = vperm.xlu0 %616, %v286
    %v618 = vpop.permute.xlu0 %617
    %620 = vset.pattern.permute.xlu0 6
    %621 = vperm.xlu0 %620, %v287
    %v622 = vpop.permute.xlu0 %621
    %624 = vset.pattern.permute.xlu0 6
    %625 = vperm.xlu0 %624, %v288
    %v626 = vpop.permute.xlu0 %625
    %628 = vset.pattern.permute.xlu0 6
    %629 = vperm.xlu0 %628, %v289
    %v630 = vpop.permute.xlu0 %629
    %632 = vset.pattern.permute.xlu0 6
    %633 = vperm.xlu0 %632, %v290
    %v634 = vpop.permute.xlu0 %633
    %v636 = vlaneseq
    %v637 = vshrl.u32 %v636, 7
    %v638 = vsub.s32 6, %v637
    %v639 = vrot.slane %v291, %v638
    %v640 = vmul.f32 %v606, %v639
    %v641 = vmul.f32 %v610, %v639
    %v642 = vmul.f32 %v614, %v639
    %v643 = vmul.f32 %v618, %v639
    %v644 = vmul.f32 %v622, %v639
    %v645 = vmul.f32 %v626, %v639
    %v646 = vmul.f32 %v630, %v639
    %v647 = vmul.f32 %v634, %v639
    %v648 = vadd.f32 %v596, %v640
    %v649 = vadd.f32 %v597, %v641
    %v650 = vadd.f32 %v598, %v642
    %v651 = vadd.f32 %v599, %v643
    %v652 = vadd.f32 %v600, %v644
    %v653 = vadd.f32 %v601, %v645
    %v654 = vadd.f32 %v602, %v646
    %v655 = vadd.f32 %v603, %v647
    %656 = vset.pattern.permute.xlu0 7
    %657 = vperm.xlu0 %656, %v283
    %v658 = vpop.permute.xlu0 %657
    %660 = vset.pattern.permute.xlu0 7
    %661 = vperm.xlu0 %660, %v284
    %v662 = vpop.permute.xlu0 %661
    %664 = vset.pattern.permute.xlu0 7
    %665 = vperm.xlu0 %664, %v285
    %v666 = vpop.permute.xlu0 %665
    %668 = vset.pattern.permute.xlu0 7
    %669 = vperm.xlu0 %668, %v286
    %v670 = vpop.permute.xlu0 %669
    %672 = vset.pattern.permute.xlu0 7
    %673 = vperm.xlu0 %672, %v287
    %v674 = vpop.permute.xlu0 %673
    %676 = vset.pattern.permute.xlu0 7
    %677 = vperm.xlu0 %676, %v288
    %v678 = vpop.permute.xlu0 %677
    %680 = vset.pattern.permute.xlu0 7
    %681 = vperm.xlu0 %680, %v289
    %v682 = vpop.permute.xlu0 %681
    %684 = vset.pattern.permute.xlu0 7
    %685 = vperm.xlu0 %684, %v290
    %v686 = vpop.permute.xlu0 %685
    %v688 = vlaneseq
    %v689 = vshrl.u32 %v688, 7
    %v690 = vsub.s32 7, %v689
    %v691 = vrot.slane %v291, %v690
    %v692 = vmul.f32 %v658, %v691
    %v693 = vmul.f32 %v662, %v691
    %v694 = vmul.f32 %v666, %v691
    %v695 = vmul.f32 %v670, %v691
    %v696 = vmul.f32 %v674, %v691
    %v697 = vmul.f32 %v678, %v691
    %v698 = vmul.f32 %v682, %v691
    %v699 = vmul.f32 %v686, %v691
    %v700 = vadd.f32 %v648, %v692
    %v701 = vadd.f32 %v649, %v693
    %v702 = vadd.f32 %v650, %v694
    %v703 = vadd.f32 %v651, %v695
    %v704 = vadd.f32 %v652, %v696
    %v705 = vadd.f32 %v653, %v697
    %v706 = vadd.f32 %v654, %v698
    %v707 = vadd.f32 %v655, %v699
    %v708 = vld [vmem:[%s7 + $0x1] sm:$0x1]
    %v709 = vlaneseq
    %v710 = vshrl.u32 %v709, 7
    %v711 = vsub.s32 0, %v710
    %v712 = vrot.slane %v708, %v711
    %v713 = vadd.f32 %v700, %v712
    %v714 = vadd.f32 %v701, %v712
    %v715 = vadd.f32 %v702, %v712
    %v716 = vadd.f32 %v703, %v712
    %v717 = vadd.f32 %v704, %v712
    %v718 = vadd.f32 %v705, %v712
    %v719 = vadd.f32 %v706, %v712
    %v720 = vadd.f32 %v707, %v712
    %v721 = vpack.c.bf16 %v714, %v713
    %v722 = vpack.c.bf16 %v716, %v715
    %v723 = vpack.c.bf16 %v718, %v717
    %v724 = vpack.c.bf16 %v720, %v719
    %v725 = vld [vmem:[%s3] sm:$0xf]
    %v726 = vld [vmem:[%s3 + $0x4] sm:$0xf]
    %v727 = vld [vmem:[%s3 + $0x8] sm:$0xf]
    %v728 = vld [vmem:[%s3 + $0xc] sm:$0xf]
    %v733 = vunpack.c.l.b16 %v725
    %v734 = vunpack.c.l.b16 %v726
    %v735 = vunpack.c.l.b16 %v727
    %v736 = vunpack.c.l.b16 %v728
    %v737 = vpack.c.b16 %v734, %v733
    %v738 = vpack.c.b16 %v736, %v735
    %vm741 = vcmask 261120
    %v743 = vsel %vm741, %v721, 0
    %v746 = vsel %vm741, %v722, 0
    %v749 = vsel %vm741, %v723, 0
    %v752 = vsel %vm741, %v724, 0
    %754 = vmatprep.subr.bf16.mxu0 0
    %755 = vmatpush1.bf16.msra.mxu0 0
    %756 = vmatprep.subr.bf16.mxu0 0
    %757 = vmatpush1.bf16.msra.mxu0 0
    %758 = vmatprep.subr.bf16.mxu0 0
    %759 = vmatpush1.bf16.msra.mxu0 0
    %760 = vmatprep.subr.bf16.mxu0 0
    %761 = vmatpush1.bf16.msra.mxu0 0
    %762 = vmatprep.subr.bf16.mxu0 0
    %763 = vmatpush1.bf16.msra.mxu0 0
    %764 = vmatprep.subr.bf16.mxu0 0
    %765 = vmatpush1.bf16.msra.mxu0 0
    %766 = vmatprep.subr.bf16.mxu0 0
    %767 = vmatpush1.bf16.msra.mxu0 %v738
    %768 = vmatprep.subr.bf16.mxu0 0
    %769 = vmatpush1.bf16.msra.mxu0 %v737
    %770 = vmatprep.subr.bf16.mxu0 0
    %771 = vmatpush2.bf16.msra.mxu0 0
    %772 = vmatprep.subr.bf16.mxu0 0
    %773 = vmatpush2.bf16.msra.mxu0 0
    %774 = vmatprep.subr.bf16.mxu0 0
    %775 = vmatpush2.bf16.msra.mxu0 0
    %776 = vmatprep.subr.bf16.mxu0 0
    %777 = vmatpush2.bf16.msra.mxu0 0
    %778 = vmatprep.subr.bf16.mxu0 0
    %779 = vmatpush2.bf16.msra.mxu0 0
    %780 = vmatprep.subr.bf16.mxu0 0
    %781 = vmatpush2.bf16.msra.mxu0 0
    %782 = vmatprep.subr.bf16.mxu0 0
    %783 = vmatpush2.bf16.msra.mxu0 0
    %784 = vmatprep.subr.bf16.mxu0 0
    %785 = vmatpush2.bf16.msra.mxu0 0
    %786 = vmatprep.mubr.bf16.mxu0 0
    %787 = vmatmul.mubr.bf16.gmra.mxu0 %v743
    %v788 = vpop.f32.mrf.mxu0
    %v789 = vadd.f32 0.0, %v788
    %v790 = vpop.f32.mrf.mxu0
    %v791 = vpop.f32.mrf.mxu0
    %v792 = vadd.f32 0.0, %v791
    %v793 = vpop.f32.mrf.mxu0
    %794 = vmatprep.mubr.bf16.mxu0 0
    %795 = vmatmul.mubr.bf16.gmra.mxu0 %v746
    %v796 = vpop.f32.mrf.mxu0
    %v797 = vadd.f32 0.0, %v796
    %v798 = vpop.f32.mrf.mxu0
    %v799 = vpop.f32.mrf.mxu0
    %v800 = vadd.f32 0.0, %v799
    %v801 = vpop.f32.mrf.mxu0
    %802 = vmatprep.mubr.bf16.mxu0 0
    %803 = vmatmul.mubr.bf16.gmra.mxu0 %v749
    %v804 = vpop.f32.mrf.mxu0
    %v805 = vadd.f32 0.0, %v804
    %v806 = vpop.f32.mrf.mxu0
    %v807 = vpop.f32.mrf.mxu0
    %v808 = vadd.f32 0.0, %v807
    %v809 = vpop.f32.mrf.mxu0
    %810 = vmatprep.mubr.bf16.mxu0 0
    %811 = vmatmul.mubr.bf16.gmra.mxu0 %v752
    %v812 = vpop.f32.mrf.mxu0
    %v813 = vadd.f32 0.0, %v812
    %v814 = vpop.f32.mrf.mxu0
    %v815 = vpop.f32.mrf.mxu0
    %v816 = vadd.f32 0.0, %v815
    %v817 = vpop.f32.mrf.mxu0
    %818 = vdwg.mxu0
    %v819 = vld [vmem:[%s7 + $0x2] sm:$0x1]
    %v820 = vlaneseq
    %v821 = vshrl.u32 %v820, 7
    %v822 = vsub.s32 0, %v821
    %v823 = vrot.slane %v819, %v822
    %v824 = vadd.f32 %v789, %v823
    %v825 = vadd.f32 %v792, %v823
    %v826 = vadd.f32 %v797, %v823
    %v827 = vadd.f32 %v800, %v823
    %v828 = vadd.f32 %v805, %v823
    %v829 = vadd.f32 %v808, %v823
    %v830 = vadd.f32 %v813, %v823
    %v831 = vadd.f32 %v816, %v823
    %v832 = vpack.c.bf16 %v825, %v824
    %v833 = vpack.c.bf16 %v827, %v826
    %v834 = vpack.c.bf16 %v829, %v828
    %v835 = vpack.c.bf16 %v831, %v830
    %837 = vrot.lane.b32.xlu0 %v832, 96
    %v838 = vpop.permute.xlu0 %837
    %v840 = vsel %vm741, %v832, 0
    %v843 = vsel %vm741, %v838, 0
    %845 = vmatprep.subr.bf16.mxu0 0
    %846 = vmatpush1.bf16.xpose.msra.mxu0 0
    %847 = vmatprep.subr.bf16.mxu0 0
    %848 = vmatpush1.bf16.xpose.msra.mxu0 0
    %849 = vmatprep.subr.bf16.mxu0 0
    %850 = vmatpush1.bf16.xpose.msra.mxu0 0
    %851 = vmatprep.subr.bf16.mxu0 0
    %852 = vmatpush1.bf16.xpose.msra.mxu0 0
    %853 = vmatprep.subr.bf16.mxu0 0
    %854 = vmatpush1.bf16.xpose.msra.mxu0 0
    %855 = vmatprep.subr.bf16.mxu0 0
    %856 = vmatpush1.bf16.xpose.msra.mxu0 0
    %857 = vmatprep.subr.bf16.mxu0 0
    %858 = vmatpush1.bf16.xpose.msra.mxu0 0
    %859 = vmatprep.subr.bf16.mxu0 0
    %860 = vmatpush1.bf16.xpose.msra.mxu0 %v843
    %861 = vmatprep.subr.bf16.mxu0 0
    %862 = vmatpush2.bf16.xpose.msra.mxu0 0
    %863 = vmatprep.subr.bf16.mxu0 0
    %864 = vmatpush2.bf16.xpose.msra.mxu0 0
    %865 = vmatprep.subr.bf16.mxu0 0
    %866 = vmatpush2.bf16.xpose.msra.mxu0 0
    %867 = vmatprep.subr.bf16.mxu0 0
    %868 = vmatpush2.bf16.xpose.msra.mxu0 0
    %869 = vmatprep.subr.bf16.mxu0 0
    %870 = vmatpush2.bf16.xpose.msra.mxu0 0
    %871 = vmatprep.subr.bf16.mxu0 0
    %872 = vmatpush2.bf16.xpose.msra.mxu0 0
    %873 = vmatprep.subr.bf16.mxu0 0
    %874 = vmatpush2.bf16.xpose.msra.mxu0 0
    %875 = vmatprep.subr.bf16.mxu0 0
    %876 = vmatpush2.bf16.xpose.msra.mxu0 0
    %877 = vmatprep.mubr.bf16.mxu0 0
    %878 = vmatmul.mubr.bf16.gmra.mxu0 %v840
    %v879 = vpop.f32.mrf.mxu0
    %v880 = vadd.f32 0.0, %v879
    %v881 = vpop.f32.mrf.mxu0
    %v882 = vpop.f32.mrf.mxu0
    %v883 = vadd.f32 0.0, %v882
    %v884 = vpop.f32.mrf.mxu0
    %885 = vdwg.mxu0
    %887 = vrot.lane.b32.xlu0 %v833, 96
    %v888 = vpop.permute.xlu0 %887
    %v890 = vsel %vm741, %v833, 0
    %v893 = vsel %vm741, %v888, 0
    %895 = vmatprep.subr.bf16.mxu0 0
    %896 = vmatpush1.bf16.xpose.msra.mxu0 0
    %897 = vmatprep.subr.bf16.mxu0 0
    %898 = vmatpush1.bf16.xpose.msra.mxu0 0
    %899 = vmatprep.subr.bf16.mxu0 0
    %900 = vmatpush1.bf16.xpose.msra.mxu0 0
    %901 = vmatprep.subr.bf16.mxu0 0
    %902 = vmatpush1.bf16.xpose.msra.mxu0 0
    %903 = vmatprep.subr.bf16.mxu0 0
    %904 = vmatpush1.bf16.xpose.msra.mxu0 0
    %905 = vmatprep.subr.bf16.mxu0 0
    %906 = vmatpush1.bf16.xpose.msra.mxu0 0
    %907 = vmatprep.subr.bf16.mxu0 0
    %908 = vmatpush1.bf16.xpose.msra.mxu0 0
    %909 = vmatprep.subr.bf16.mxu0 0
    %910 = vmatpush1.bf16.xpose.msra.mxu0 %v893
    %911 = vmatprep.subr.bf16.mxu0 0
    %912 = vmatpush2.bf16.xpose.msra.mxu0 0
    %913 = vmatprep.subr.bf16.mxu0 0
    %914 = vmatpush2.bf16.xpose.msra.mxu0 0
    %915 = vmatprep.subr.bf16.mxu0 0
    %916 = vmatpush2.bf16.xpose.msra.mxu0 0
    %917 = vmatprep.subr.bf16.mxu0 0
    %918 = vmatpush2.bf16.xpose.msra.mxu0 0
    %919 = vmatprep.subr.bf16.mxu0 0
    %920 = vmatpush2.bf16.xpose.msra.mxu0 0
    %921 = vmatprep.subr.bf16.mxu0 0
    %922 = vmatpush2.bf16.xpose.msra.mxu0 0
    %923 = vmatprep.subr.bf16.mxu0 0
    %924 = vmatpush2.bf16.xpose.msra.mxu0 0
    %925 = vmatprep.subr.bf16.mxu0 0
    %926 = vmatpush2.bf16.xpose.msra.mxu0 0
    %927 = vmatprep.mubr.bf16.mxu0 0
    %928 = vmatmul.mubr.bf16.gmra.mxu0 %v890
    %v929 = vpop.f32.mrf.mxu0
    %v930 = vadd.f32 0.0, %v929
    %v931 = vpop.f32.mrf.mxu0
    %v932 = vpop.f32.mrf.mxu0
    %v933 = vadd.f32 0.0, %v932
    %v934 = vpop.f32.mrf.mxu0
    %935 = vdwg.mxu0
    %937 = vrot.lane.b32.xlu0 %v834, 96
    %v938 = vpop.permute.xlu0 %937
    %v940 = vsel %vm741, %v834, 0
    %v943 = vsel %vm741, %v938, 0
    %945 = vmatprep.subr.bf16.mxu0 0
    %946 = vmatpush1.bf16.xpose.msra.mxu0 0
    %947 = vmatprep.subr.bf16.mxu0 0
    %948 = vmatpush1.bf16.xpose.msra.mxu0 0
    %949 = vmatprep.subr.bf16.mxu0 0
    %950 = vmatpush1.bf16.xpose.msra.mxu0 0
    %951 = vmatprep.subr.bf16.mxu0 0
    %952 = vmatpush1.bf16.xpose.msra.mxu0 0
    %953 = vmatprep.subr.bf16.mxu0 0
    %954 = vmatpush1.bf16.xpose.msra.mxu0 0
    %955 = vmatprep.subr.bf16.mxu0 0
    %956 = vmatpush1.bf16.xpose.msra.mxu0 0
    %957 = vmatprep.subr.bf16.mxu0 0
    %958 = vmatpush1.bf16.xpose.msra.mxu0 0
    %959 = vmatprep.subr.bf16.mxu0 0
    %960 = vmatpush1.bf16.xpose.msra.mxu0 %v943
    %961 = vmatprep.subr.bf16.mxu0 0
    %962 = vmatpush2.bf16.xpose.msra.mxu0 0
    %963 = vmatprep.subr.bf16.mxu0 0
    %964 = vmatpush2.bf16.xpose.msra.mxu0 0
    %965 = vmatprep.subr.bf16.mxu0 0
    %966 = vmatpush2.bf16.xpose.msra.mxu0 0
    %967 = vmatprep.subr.bf16.mxu0 0
    %968 = vmatpush2.bf16.xpose.msra.mxu0 0
    %969 = vmatprep.subr.bf16.mxu0 0
    %970 = vmatpush2.bf16.xpose.msra.mxu0 0
    %971 = vmatprep.subr.bf16.mxu0 0
    %972 = vmatpush2.bf16.xpose.msra.mxu0 0
    %973 = vmatprep.subr.bf16.mxu0 0
    %974 = vmatpush2.bf16.xpose.msra.mxu0 0
    %975 = vmatprep.subr.bf16.mxu0 0
    %976 = vmatpush2.bf16.xpose.msra.mxu0 0
    %977 = vmatprep.mubr.bf16.mxu0 0
    %978 = vmatmul.mubr.bf16.gmra.mxu0 %v940
    %v979 = vpop.f32.mrf.mxu0
    %v980 = vadd.f32 0.0, %v979
    %v981 = vpop.f32.mrf.mxu0
    %v982 = vpop.f32.mrf.mxu0
    %v983 = vadd.f32 0.0, %v982
    %v984 = vpop.f32.mrf.mxu0
    %985 = vdwg.mxu0
    %987 = vrot.lane.b32.xlu0 %v835, 96
    %v988 = vpop.permute.xlu0 %987
    %v990 = vsel %vm741, %v835, 0
    %v993 = vsel %vm741, %v988, 0
    %995 = vmatprep.subr.bf16.mxu0 0
    %996 = vmatpush1.bf16.xpose.msra.mxu0 0
    %997 = vmatprep.subr.bf16.mxu0 0
    %998 = vmatpush1.bf16.xpose.msra.mxu0 0
    %999 = vmatprep.subr.bf16.mxu0 0
    %1000 = vmatpush1.bf16.xpose.msra.mxu0 0
    %1001 = vmatprep.subr.bf16.mxu0 0
    %1002 = vmatpush1.bf16.xpose.msra.mxu0 0
    %1003 = vmatprep.subr.bf16.mxu0 0
    %1004 = vmatpush1.bf16.xpose.msra.mxu0 0
    %1005 = vmatprep.subr.bf16.mxu0 0
    %1006 = vmatpush1.bf16.xpose.msra.mxu0 0
    %1007 = vmatprep.subr.bf16.mxu0 0
    %1008 = vmatpush1.bf16.xpose.msra.mxu0 0
    %1009 = vmatprep.subr.bf16.mxu0 0
    %1010 = vmatpush1.bf16.xpose.msra.mxu0 %v993
    %1011 = vmatprep.subr.bf16.mxu0 0
    %1012 = vmatpush2.bf16.xpose.msra.mxu0 0
    %1013 = vmatprep.subr.bf16.mxu0 0
    %1014 = vmatpush2.bf16.xpose.msra.mxu0 0
    %1015 = vmatprep.subr.bf16.mxu0 0
    %1016 = vmatpush2.bf16.xpose.msra.mxu0 0
    %1017 = vmatprep.subr.bf16.mxu0 0
    %1018 = vmatpush2.bf16.xpose.msra.mxu0 0
    %1019 = vmatprep.subr.bf16.mxu0 0
    %1020 = vmatpush2.bf16.xpose.msra.mxu0 0
    %1021 = vmatprep.subr.bf16.mxu0 0
    %1022 = vmatpush2.bf16.xpose.msra.mxu0 0
    %1023 = vmatprep.subr.bf16.mxu0 0
    %1024 = vmatpush2.bf16.xpose.msra.mxu0 0
    %1025 = vmatprep.subr.bf16.mxu0 0
    %1026 = vmatpush2.bf16.xpose.msra.mxu0 0
    %1027 = vmatprep.mubr.bf16.mxu0 0
    %1028 = vmatmul.mubr.bf16.gmra.mxu0 %v990
    %v1029 = vpop.f32.mrf.mxu0
    %v1030 = vadd.f32 0.0, %v1029
    %v1031 = vpop.f32.mrf.mxu0
    %v1032 = vpop.f32.mrf.mxu0
    %v1033 = vadd.f32 0.0, %v1032
    %v1034 = vpop.f32.mrf.mxu0
    %1035 = vdwg.mxu0
    %vm1036 = vcmask 130048
    %v1037 = vsel %vm1036, %v880, -inf
    %1038 = vmax.xlane.f32.xlu0 %v1037
    %v1039 = vpop.xlane.xlu0 %1038
    %v1040 = vsel %vm1036, %v883, -inf
    %1041 = vmax.xlane.f32.xlu0 %v1040
    %v1042 = vpop.xlane.xlu0 %1041
    %v1043 = vsel %vm1036, %v930, -inf
    %1044 = vmax.xlane.f32.xlu0 %v1043
    %v1045 = vpop.xlane.xlu0 %1044
    %v1046 = vsel %vm1036, %v933, -inf
    %1047 = vmax.xlane.f32.xlu0 %v1046
    %v1048 = vpop.xlane.xlu0 %1047
    %v1049 = vsel %vm1036, %v980, -inf
    %1050 = vmax.xlane.f32.xlu0 %v1049
    %v1051 = vpop.xlane.xlu0 %1050
    %v1052 = vsel %vm1036, %v983, -inf
    %1053 = vmax.xlane.f32.xlu0 %v1052
    %v1054 = vpop.xlane.xlu0 %1053
    %v1055 = vsel %vm1036, %v1030, -inf
    %1056 = vmax.xlane.f32.xlu0 %v1055
    %v1057 = vpop.xlane.xlu0 %1056
    %v1058 = vsel %vm1036, %v1033, -inf
    %1059 = vmax.xlane.f32.xlu0 %v1058
    %v1060 = vpop.xlane.xlu0 %1059
    %v1061 = vsub.f32 %v880, %v1039
    %v1062 = vsub.f32 %v883, %v1042
    %v1063 = vsub.f32 %v930, %v1045
    %v1064 = vsub.f32 %v933, %v1048
    %v1065 = vsub.f32 %v980, %v1051
    %v1066 = vsub.f32 %v983, %v1054
    %v1067 = vsub.f32 %v1030, %v1057
    %v1068 = vsub.f32 %v1033, %v1060
    %v1069 = vmul.f32 %v1061, 1.442695
    %v1070 = vpow.pop %v1069
    %v1071 = vmul.f32 %v1062, 1.442695
    %v1072 = vpow.pop %v1071
    %v1073 = vmul.f32 %v1063, 1.442695
    %v1074 = vpow.pop %v1073
    %v1075 = vmul.f32 %v1064, 1.442695
    %v1076 = vpow.pop %v1075
    %v1077 = vmul.f32 %v1065, 1.442695
    %v1078 = vpow.pop %v1077
    %v1079 = vmul.f32 %v1066, 1.442695
    %v1080 = vpow.pop %v1079
    %v1081 = vmul.f32 %v1067, 1.442695
    %v1082 = vpow.pop %v1081
    %v1083 = vmul.f32 %v1068, 1.442695
    %v1084 = vpow.pop %v1083
    %v1085 = vsel %vm1036, %v1070, 0.0
    %1086 = vadd.xlane.f32.xlu0 %v1085
    %v1087 = vpop.xlane.xlu0 %1086
    %v1088 = vsel %vm1036, %v1072, 0.0
    %1089 = vadd.xlane.f32.xlu0 %v1088
    %v1090 = vpop.xlane.xlu0 %1089
    %v1091 = vsel %vm1036, %v1074, 0.0
    %1092 = vadd.xlane.f32.xlu0 %v1091
    %v1093 = vpop.xlane.xlu0 %1092
    %v1094 = vsel %vm1036, %v1076, 0.0
    %1095 = vadd.xlane.f32.xlu0 %v1094
    %v1096 = vpop.xlane.xlu0 %1095
    %v1097 = vsel %vm1036, %v1078, 0.0
    %1098 = vadd.xlane.f32.xlu0 %v1097
    %v1099 = vpop.xlane.xlu0 %1098
    %v1100 = vsel %vm1036, %v1080, 0.0
    %1101 = vadd.xlane.f32.xlu0 %v1100
    %v1102 = vpop.xlane.xlu0 %1101
    %v1103 = vsel %vm1036, %v1082, 0.0
    %1104 = vadd.xlane.f32.xlu0 %v1103
    %v1105 = vpop.xlane.xlu0 %1104
    %v1106 = vsel %vm1036, %v1084, 0.0
    %1107 = vadd.xlane.f32.xlu0 %v1106
    %v1108 = vpop.xlane.xlu0 %1107
    %v1109 = vrcp.pop %v1087
    %v1110 = vrcp.pop %v1090
    %v1111 = vrcp.pop %v1093
    %v1112 = vrcp.pop %v1096
    %v1113 = vrcp.pop %v1099
    %v1114 = vrcp.pop %v1102
    %v1115 = vrcp.pop %v1105
    %v1116 = vrcp.pop %v1108
    %v1117 = vmul.f32 %v1070, %v1109
    %v1118 = vmul.f32 %v1072, %v1110
    %v1119 = vmul.f32 %v1074, %v1111
    %v1120 = vmul.f32 %v1076, %v1112
    %v1121 = vmul.f32 %v1078, %v1113
    %v1122 = vmul.f32 %v1080, %v1114
    %v1123 = vmul.f32 %v1082, %v1115
    %v1124 = vmul.f32 %v1084, %v1116
    %v1125 = vpack.c.bf16 %v1118, %v1117
    %v1126 = vpack.c.bf16 %v1120, %v1119
    %v1127 = vpack.c.bf16 %v1122, %v1121
    %v1128 = vpack.c.bf16 %v1124, %v1123
    %1129 = vrot.lane.b32.xlu0 %v832, 64
    %v1130 = vpop.permute.xlu0 %1129
    %v1133 = vsel %vm1036, %v1125, 0
    %1135 = vmatprep.subr.bf16.mxu0 0
    %1136 = vmatpush1.bf16.msra.mxu0 0
    %1137 = vmatprep.subr.bf16.mxu0 0
    %1138 = vmatpush1.bf16.msra.mxu0 0
    %1139 = vmatprep.subr.bf16.mxu0 0
    %1140 = vmatpush1.bf16.msra.mxu0 0
    %1141 = vmatprep.subr.bf16.mxu0 0
    %1142 = vmatpush1.bf16.msra.mxu0 0
    %1143 = vmatprep.subr.bf16.mxu0 0
    %1144 = vmatpush1.bf16.msra.mxu0 0
    %1145 = vmatprep.subr.bf16.mxu0 0
    %1146 = vmatpush1.bf16.msra.mxu0 0
    %1147 = vmatprep.subr.bf16.mxu0 0
    %1148 = vmatpush1.bf16.msra.mxu0 0
    %1149 = vmatprep.subr.bf16.mxu0 0
    %1150 = vmatpush1.bf16.msra.mxu0 %v1130
    %1151 = vmatprep.subr.bf16.mxu0 0
    %1152 = vmatpush2.bf16.msra.mxu0 0
    %1153 = vmatprep.subr.bf16.mxu0 0
    %1154 = vmatpush2.bf16.msra.mxu0 0
    %1155 = vmatprep.subr.bf16.mxu0 0
    %1156 = vmatpush2.bf16.msra.mxu0 0
    %1157 = vmatprep.subr.bf16.mxu0 0
    %1158 = vmatpush2.bf16.msra.mxu0 0
    %1159 = vmatprep.subr.bf16.mxu0 0
    %1160 = vmatpush2.bf16.msra.mxu0 0
    %1161 = vmatprep.subr.bf16.mxu0 0
    %1162 = vmatpush2.bf16.msra.mxu0 0
    %1163 = vmatprep.subr.bf16.mxu0 0
    %1164 = vmatpush2.bf16.msra.mxu0 0
    %1165 = vmatprep.subr.bf16.mxu0 0
    %1166 = vmatpush2.bf16.msra.mxu0 0
    %1167 = vmatprep.mubr.bf16.mxu0 0
    %1168 = vmatmul.mubr.bf16.gmra.mxu0 %v1133
    %v1169 = vpop.f32.mrf.mxu0
    %v1170 = vadd.f32 0.0, %v1169
    %v1171 = vpop.f32.mrf.mxu0
    %v1172 = vpop.f32.mrf.mxu0
    %v1173 = vadd.f32 0.0, %v1172
    %v1174 = vpop.f32.mrf.mxu0
    %1175 = vdwg.mxu0
    %1176 = vrot.lane.b32.xlu0 %v833, 64
    %v1177 = vpop.permute.xlu0 %1176
    %v1180 = vsel %vm1036, %v1126, 0
    %1182 = vmatprep.subr.bf16.mxu0 0
    %1183 = vmatpush1.bf16.msra.mxu0 0
    %1184 = vmatprep.subr.bf16.mxu0 0
    %1185 = vmatpush1.bf16.msra.mxu0 0
    %1186 = vmatprep.subr.bf16.mxu0 0
    %1187 = vmatpush1.bf16.msra.mxu0 0
    %1188 = vmatprep.subr.bf16.mxu0 0
    %1189 = vmatpush1.bf16.msra.mxu0 0
    %1190 = vmatprep.subr.bf16.mxu0 0
    %1191 = vmatpush1.bf16.msra.mxu0 0
    %1192 = vmatprep.subr.bf16.mxu0 0
    %1193 = vmatpush1.bf16.msra.mxu0 0
    %1194 = vmatprep.subr.bf16.mxu0 0
    %1195 = vmatpush1.bf16.msra.mxu0 0
    %1196 = vmatprep.subr.bf16.mxu0 0
    %1197 = vmatpush1.bf16.msra.mxu0 %v1177
    %1198 = vmatprep.subr.bf16.mxu0 0
    %1199 = vmatpush2.bf16.msra.mxu0 0
    %1200 = vmatprep.subr.bf16.mxu0 0
    %1201 = vmatpush2.bf16.msra.mxu0 0
    %1202 = vmatprep.subr.bf16.mxu0 0
    %1203 = vmatpush2.bf16.msra.mxu0 0
    %1204 = vmatprep.subr.bf16.mxu0 0
    %1205 = vmatpush2.bf16.msra.mxu0 0
    %1206 = vmatprep.subr.bf16.mxu0 0
    %1207 = vmatpush2.bf16.msra.mxu0 0
    %1208 = vmatprep.subr.bf16.mxu0 0
    %1209 = vmatpush2.bf16.msra.mxu0 0
    %1210 = vmatprep.subr.bf16.mxu0 0
    %1211 = vmatpush2.bf16.msra.mxu0 0
    %1212 = vmatprep.subr.bf16.mxu0 0
    %1213 = vmatpush2.bf16.msra.mxu0 0
    %1214 = vmatprep.mubr.bf16.mxu0 0
    %1215 = vmatmul.mubr.bf16.gmra.mxu0 %v1180
    %v1216 = vpop.f32.mrf.mxu0
    %v1217 = vadd.f32 0.0, %v1216
    %v1218 = vpop.f32.mrf.mxu0
    %v1219 = vpop.f32.mrf.mxu0
    %v1220 = vadd.f32 0.0, %v1219
    %v1221 = vpop.f32.mrf.mxu0
    %1222 = vdwg.mxu0
    %1223 = vrot.lane.b32.xlu0 %v834, 64
    %v1224 = vpop.permute.xlu0 %1223
    %v1227 = vsel %vm1036, %v1127, 0
    %1229 = vmatprep.subr.bf16.mxu0 0
    %1230 = vmatpush1.bf16.msra.mxu0 0
    %1231 = vmatprep.subr.bf16.mxu0 0
    %1232 = vmatpush1.bf16.msra.mxu0 0
    %1233 = vmatprep.subr.bf16.mxu0 0
    %1234 = vmatpush1.bf16.msra.mxu0 0
    %1235 = vmatprep.subr.bf16.mxu0 0
    %1236 = vmatpush1.bf16.msra.mxu0 0
    %1237 = vmatprep.subr.bf16.mxu0 0
    %1238 = vmatpush1.bf16.msra.mxu0 0
    %1239 = vmatprep.subr.bf16.mxu0 0
    %1240 = vmatpush1.bf16.msra.mxu0 0
    %1241 = vmatprep.subr.bf16.mxu0 0
    %1242 = vmatpush1.bf16.msra.mxu0 0
    %1243 = vmatprep.subr.bf16.mxu0 0
    %1244 = vmatpush1.bf16.msra.mxu0 %v1224
    %1245 = vmatprep.subr.bf16.mxu0 0
    %1246 = vmatpush2.bf16.msra.mxu0 0
    %1247 = vmatprep.subr.bf16.mxu0 0
    %1248 = vmatpush2.bf16.msra.mxu0 0
    %1249 = vmatprep.subr.bf16.mxu0 0
    %1250 = vmatpush2.bf16.msra.mxu0 0
    %1251 = vmatprep.subr.bf16.mxu0 0
    %1252 = vmatpush2.bf16.msra.mxu0 0
    %1253 = vmatprep.subr.bf16.mxu0 0
    %1254 = vmatpush2.bf16.msra.mxu0 0
    %1255 = vmatprep.subr.bf16.mxu0 0
    %1256 = vmatpush2.bf16.msra.mxu0 0
    %1257 = vmatprep.subr.bf16.mxu0 0
    %1258 = vmatpush2.bf16.msra.mxu0 0
    %1259 = vmatprep.subr.bf16.mxu0 0
    %1260 = vmatpush2.bf16.msra.mxu0 0
    %1261 = vmatprep.mubr.bf16.mxu0 0
    %1262 = vmatmul.mubr.bf16.gmra.mxu0 %v1227
    %v1263 = vpop.f32.mrf.mxu0
    %v1264 = vadd.f32 0.0, %v1263
    %v1265 = vpop.f32.mrf.mxu0
    %v1266 = vpop.f32.mrf.mxu0
    %v1267 = vadd.f32 0.0, %v1266
    %v1268 = vpop.f32.mrf.mxu0
    %1269 = vdwg.mxu0
    %1270 = vrot.lane.b32.xlu0 %v835, 64
    %v1271 = vpop.permute.xlu0 %1270
    %v1274 = vsel %vm1036, %v1128, 0
    %1276 = vmatprep.subr.bf16.mxu0 0
    %1277 = vmatpush1.bf16.msra.mxu0 0
    %1278 = vmatprep.subr.bf16.mxu0 0
    %1279 = vmatpush1.bf16.msra.mxu0 0
    %1280 = vmatprep.subr.bf16.mxu0 0
    %1281 = vmatpush1.bf16.msra.mxu0 0
    %1282 = vmatprep.subr.bf16.mxu0 0
    %1283 = vmatpush1.bf16.msra.mxu0 0
    %1284 = vmatprep.subr.bf16.mxu0 0
    %1285 = vmatpush1.bf16.msra.mxu0 0
    %1286 = vmatprep.subr.bf16.mxu0 0
    %1287 = vmatpush1.bf16.msra.mxu0 0
    %1288 = vmatprep.subr.bf16.mxu0 0
    %1289 = vmatpush1.bf16.msra.mxu0 0
    %1290 = vmatprep.subr.bf16.mxu0 0
    %1291 = vmatpush1.bf16.msra.mxu0 %v1271
    %1292 = vmatprep.subr.bf16.mxu0 0
    %1293 = vmatpush2.bf16.msra.mxu0 0
    %1294 = vmatprep.subr.bf16.mxu0 0
    %1295 = vmatpush2.bf16.msra.mxu0 0
    %1296 = vmatprep.subr.bf16.mxu0 0
    %1297 = vmatpush2.bf16.msra.mxu0 0
    %1298 = vmatprep.subr.bf16.mxu0 0
    %1299 = vmatpush2.bf16.msra.mxu0 0
    %1300 = vmatprep.subr.bf16.mxu0 0
    %1301 = vmatpush2.bf16.msra.mxu0 0
    %1302 = vmatprep.subr.bf16.mxu0 0
    %1303 = vmatpush2.bf16.msra.mxu0 0
    %1304 = vmatprep.subr.bf16.mxu0 0
    %1305 = vmatpush2.bf16.msra.mxu0 0
    %1306 = vmatprep.subr.bf16.mxu0 0
    %1307 = vmatpush2.bf16.msra.mxu0 0
    %1308 = vmatprep.mubr.bf16.mxu0 0
    %1309 = vmatmul.mubr.bf16.gmra.mxu0 %v1274
    %v1310 = vpop.f32.mrf.mxu0
    %v1311 = vadd.f32 0.0, %v1310
    %v1312 = vpop.f32.mrf.mxu0
    %v1313 = vpop.f32.mrf.mxu0
    %v1314 = vadd.f32 0.0, %v1313
    %v1315 = vpop.f32.mrf.mxu0
    %1316 = vdwg.mxu0
    %v1317 = vpack.c.bf16 %v1173, %v1170
    %v1318 = vpack.c.bf16 %v1220, %v1217
    %v1319 = vpack.c.bf16 %v1267, %v1264
    %v1320 = vpack.c.bf16 %v1314, %v1311
    %v1321 = vld [vmem:[%s4] sm:$0xf]
    %v1322 = vld [vmem:[%s4 + $0x4] sm:$0xf]
    %v1323 = vld [vmem:[%s4 + $0x8] sm:$0xf]
    %v1324 = vld [vmem:[%s4 + $0xc] sm:$0xf]
    %v1325 = vld [vmem:[%s7 + $0x3] sm:$0x1]
    %v1326 = vlaneseq
    %v1327 = vshrl.u32 %v1326, 7
    %v1328 = vsub.s32 0, %v1327
    %v1329 = vrot.slane %v1325, %v1328
    %v1334 = vunpack.c.l.b16 %v1321
    %v1335 = vunpack.c.l.b16 %v1322
    %v1336 = vunpack.c.l.b16 %v1323
    %v1337 = vunpack.c.l.b16 %v1324
    %v1338 = vpack.c.b16 %v1335, %v1334
    %v1339 = vpack.c.b16 %v1337, %v1336
    %v1343 = vsel %vm741, %v1317, 0
    %v1346 = vsel %vm741, %v1318, 0
    %v1349 = vsel %vm741, %v1319, 0
    %v1352 = vsel %vm741, %v1320, 0
    %1354 = vmatprep.subr.bf16.mxu0 0
    %1355 = vmatpush1.bf16.msra.mxu0 0
    %1356 = vmatprep.subr.bf16.mxu0 0
    %1357 = vmatpush1.bf16.msra.mxu0 0
    %1358 = vmatprep.subr.bf16.mxu0 0
    %1359 = vmatpush1.bf16.msra.mxu0 0
    %1360 = vmatprep.subr.bf16.mxu0 0
    %1361 = vmatpush1.bf16.msra.mxu0 0
    %1362 = vmatprep.subr.bf16.mxu0 0
    %1363 = vmatpush1.bf16.msra.mxu0 0
    %1364 = vmatprep.subr.bf16.mxu0 0
    %1365 = vmatpush1.bf16.msra.mxu0 0
    %1366 = vmatprep.subr.bf16.mxu0 0
    %1367 = vmatpush1.bf16.msra.mxu0 %v1339
    %1368 = vmatprep.subr.bf16.mxu0 0
    %1369 = vmatpush1.bf16.msra.mxu0 %v1338
    %1370 = vmatprep.subr.bf16.mxu0 0
    %1371 = vmatpush2.bf16.msra.mxu0 0
    %1372 = vmatprep.subr.bf16.mxu0 0
    %1373 = vmatpush2.bf16.msra.mxu0 0
    %1374 = vmatprep.subr.bf16.mxu0 0
    %1375 = vmatpush2.bf16.msra.mxu0 0
    %1376 = vmatprep.subr.bf16.mxu0 0
    %1377 = vmatpush2.bf16.msra.mxu0 0
    %1378 = vmatprep.subr.bf16.mxu0 0
    %1379 = vmatpush2.bf16.msra.mxu0 0
    %1380 = vmatprep.subr.bf16.mxu0 0
    %1381 = vmatpush2.bf16.msra.mxu0 0
    %1382 = vmatprep.subr.bf16.mxu0 0
    %1383 = vmatpush2.bf16.msra.mxu0 0
    %1384 = vmatprep.subr.bf16.mxu0 0
    %1385 = vmatpush2.bf16.msra.mxu0 0
    %1386 = vmatprep.mubr.bf16.mxu0 0
    %1387 = vmatmul.mubr.bf16.gmra.mxu0 %v1343
    %v1388 = vpop.f32.mrf.mxu0
    %v1389 = vadd.f32 %v1329, %v1388
    %v1390 = vpop.f32.mrf.mxu0
    %v1391 = vpop.f32.mrf.mxu0
    %v1392 = vadd.f32 %v1329, %v1391
    %v1393 = vpop.f32.mrf.mxu0
    %1394 = vmatprep.mubr.bf16.mxu0 0
    %1395 = vmatmul.mubr.bf16.gmra.mxu0 %v1346
    %v1396 = vpop.f32.mrf.mxu0
    %v1397 = vadd.f32 %v1329, %v1396
    %v1398 = vpop.f32.mrf.mxu0
    %v1399 = vpop.f32.mrf.mxu0
    %v1400 = vadd.f32 %v1329, %v1399
    %v1401 = vpop.f32.mrf.mxu0
    %1402 = vmatprep.mubr.bf16.mxu0 0
    %1403 = vmatmul.mubr.bf16.gmra.mxu0 %v1349
    %v1404 = vpop.f32.mrf.mxu0
    %v1405 = vadd.f32 %v1329, %v1404
    %v1406 = vpop.f32.mrf.mxu0
    %v1407 = vpop.f32.mrf.mxu0
    %v1408 = vadd.f32 %v1329, %v1407
    %v1409 = vpop.f32.mrf.mxu0
    %1410 = vmatprep.mubr.bf16.mxu0 0
    %1411 = vmatmul.mubr.bf16.gmra.mxu0 %v1352
    %v1412 = vpop.f32.mrf.mxu0
    %v1413 = vadd.f32 %v1329, %v1412
    %v1414 = vpop.f32.mrf.mxu0
    %v1415 = vpop.f32.mrf.mxu0
    %v1416 = vadd.f32 %v1329, %v1415
    %v1417 = vpop.f32.mrf.mxu0
    %1418 = vdwg.mxu0
    %v1419 = vadd.f32 %v713, %v1389
    %v1420 = vadd.f32 %v714, %v1392
    %v1421 = vadd.f32 %v715, %v1397
    %v1422 = vadd.f32 %v716, %v1400
    %v1423 = vadd.f32 %v717, %v1405
    %v1424 = vadd.f32 %v718, %v1408
    %v1425 = vadd.f32 %v719, %v1413
    %v1426 = vadd.f32 %v720, %v1416
    %v1427 = vld [vmem:[%s7 + $0x4] sm:$0x1]
    %v1428 = vld [vmem:[%s7 + $0x5] sm:$0x1]
    %v1429 = vsel %vm741, %v1419, 0.0
    %1430 = vadd.xlane.f32.xlu0 %v1429
    %v1431 = vpop.xlane.xlu0 %1430
    %v1432 = vsel %vm741, %v1420, 0.0
    %1433 = vadd.xlane.f32.xlu0 %v1432
    %v1434 = vpop.xlane.xlu0 %1433
    %v1435 = vsel %vm741, %v1421, 0.0
    %1436 = vadd.xlane.f32.xlu0 %v1435
    %v1437 = vpop.xlane.xlu0 %1436
    %v1438 = vsel %vm741, %v1422, 0.0
    %1439 = vadd.xlane.f32.xlu0 %v1438
    %v1440 = vpop.xlane.xlu0 %1439
    %v1441 = vsel %vm741, %v1423, 0.0
    %1442 = vadd.xlane.f32.xlu0 %v1441
    %v1443 = vpop.xlane.xlu0 %1442
    %v1444 = vsel %vm741, %v1424, 0.0
    %1445 = vadd.xlane.f32.xlu0 %v1444
    %v1446 = vpop.xlane.xlu0 %1445
    %v1447 = vsel %vm741, %v1425, 0.0
    %1448 = vadd.xlane.f32.xlu0 %v1447
    %v1449 = vpop.xlane.xlu0 %1448
    %v1450 = vsel %vm741, %v1426, 0.0
    %1451 = vadd.xlane.f32.xlu0 %v1450
    %v1452 = vpop.xlane.xlu0 %1451
    %v1453 = vrcp.pop 32.0
    %v1454 = vmul.f32 %v1431, %v1453
    %v1455 = vmul.f32 %v1434, %v1453
    %v1456 = vmul.f32 %v1437, %v1453
    %v1457 = vmul.f32 %v1440, %v1453
    %v1458 = vmul.f32 %v1443, %v1453
    %v1459 = vmul.f32 %v1446, %v1453
    %v1460 = vmul.f32 %v1449, %v1453
    %v1461 = vmul.f32 %v1452, %v1453
    %v1462 = vsub.f32 %v1419, %v1454
    %v1463 = vsub.f32 %v1420, %v1455
    %v1464 = vsub.f32 %v1421, %v1456
    %v1465 = vsub.f32 %v1422, %v1457
    %v1466 = vsub.f32 %v1423, %v1458
    %v1467 = vsub.f32 %v1424, %v1459
    %v1468 = vsub.f32 %v1425, %v1460
    %v1469 = vsub.f32 %v1426, %v1461
    %v1470 = vmul.f32 %v1462, %v1462
    %v1471 = vmul.f32 %v1463, %v1463
    %v1472 = vmul.f32 %v1464, %v1464
    %v1473 = vmul.f32 %v1465, %v1465
    %v1474 = vmul.f32 %v1466, %v1466
    %v1475 = vmul.f32 %v1467, %v1467
    %v1476 = vmul.f32 %v1468, %v1468
    %v1477 = vmul.f32 %v1469, %v1469
    %v1478 = vsel %vm741, %v1470, 0.0
    %1479 = vadd.xlane.f32.xlu0 %v1478
    %v1480 = vpop.xlane.xlu0 %1479
    %v1481 = vsel %vm741, %v1471, 0.0
    %1482 = vadd.xlane.f32.xlu0 %v1481
    %v1483 = vpop.xlane.xlu0 %1482
    %v1484 = vsel %vm741, %v1472, 0.0
    %1485 = vadd.xlane.f32.xlu0 %v1484
    %v1486 = vpop.xlane.xlu0 %1485
    %v1487 = vsel %vm741, %v1473, 0.0
    %1488 = vadd.xlane.f32.xlu0 %v1487
    %v1489 = vpop.xlane.xlu0 %1488
    %v1490 = vsel %vm741, %v1474, 0.0
    %1491 = vadd.xlane.f32.xlu0 %v1490
    %v1492 = vpop.xlane.xlu0 %1491
    %v1493 = vsel %vm741, %v1475, 0.0
    %1494 = vadd.xlane.f32.xlu0 %v1493
    %v1495 = vpop.xlane.xlu0 %1494
    %v1496 = vsel %vm741, %v1476, 0.0
    %1497 = vadd.xlane.f32.xlu0 %v1496
    %v1498 = vpop.xlane.xlu0 %1497
    %v1499 = vsel %vm741, %v1477, 0.0
    %1500 = vadd.xlane.f32.xlu0 %v1499
    %v1501 = vpop.xlane.xlu0 %1500
    %v1502 = vmul.f32 %v1480, %v1453
    %v1503 = vmul.f32 %v1483, %v1453
    %v1504 = vmul.f32 %v1486, %v1453
    %v1505 = vmul.f32 %v1489, %v1453
    %v1506 = vmul.f32 %v1492, %v1453
    %v1507 = vmul.f32 %v1495, %v1453
    %v1508 = vmul.f32 %v1498, %v1453
    %v1509 = vmul.f32 %v1501, %v1453
    %v1510 = vadd.f32 %v1502, 1e-05
    %v1511 = vadd.f32 %v1503, 1e-05
    %v1512 = vadd.f32 %v1504, 1e-05
    %v1513 = vadd.f32 %v1505, 1e-05
    %v1514 = vadd.f32 %v1506, 1e-05
    %v1515 = vadd.f32 %v1507, 1e-05
    %v1516 = vadd.f32 %v1508, 1e-05
    %v1517 = vadd.f32 %v1509, 1e-05
    %v1518 = vrsqrt.pop %v1510
    %v1519 = vrsqrt.pop %v1511
    %v1520 = vrsqrt.pop %v1512
    %v1521 = vrsqrt.pop %v1513
    %v1522 = vrsqrt.pop %v1514
    %v1523 = vrsqrt.pop %v1515
    %v1524 = vrsqrt.pop %v1516
    %v1525 = vrsqrt.pop %v1517
    %v1526 = vmul.f32 %v1462, %v1518
    %v1527 = vmul.f32 %v1463, %v1519
    %v1528 = vmul.f32 %v1464, %v1520
    %v1529 = vmul.f32 %v1465, %v1521
    %v1530 = vmul.f32 %v1466, %v1522
    %v1531 = vmul.f32 %v1467, %v1523
    %v1532 = vmul.f32 %v1468, %v1524
    %v1533 = vmul.f32 %v1469, %v1525
    %v1534 = vlaneseq
    %v1535 = vshrl.u32 %v1534, 7
    %v1536 = vsub.s32 0, %v1535
    %v1537 = vrot.slane %v1427, %v1536
    %v1538 = vmul.f32 %v1526, %v1537
    %v1539 = vmul.f32 %v1527, %v1537
    %v1540 = vmul.f32 %v1528, %v1537
    %v1541 = vmul.f32 %v1529, %v1537
    %v1542 = vmul.f32 %v1530, %v1537
    %v1543 = vmul.f32 %v1531, %v1537
    %v1544 = vmul.f32 %v1532, %v1537
    %v1545 = vmul.f32 %v1533, %v1537
    %v1546 = vlaneseq
    %v1547 = vshrl.u32 %v1546, 7
    %v1548 = vsub.s32 0, %v1547
    %v1549 = vrot.slane %v1428, %v1548
    %v1550 = vadd.f32 %v1538, %v1549
    %v1551 = vadd.f32 %v1539, %v1549
    %v1552 = vadd.f32 %v1540, %v1549
    %v1553 = vadd.f32 %v1541, %v1549
    %v1554 = vadd.f32 %v1542, %v1549
    %v1555 = vadd.f32 %v1543, %v1549
    %v1556 = vadd.f32 %v1544, %v1549
    %v1557 = vadd.f32 %v1545, %v1549
    %v1558 = vpack.c.bf16 %v1551, %v1550
    %v1559 = vpack.c.bf16 %v1553, %v1552
    %v1560 = vpack.c.bf16 %v1555, %v1554
    %v1561 = vpack.c.bf16 %v1557, %v1556
    %v1562 = vld [vmem:[%s5] sm:$0xf]
    %v1563 = vld [vmem:[%s5 + $0x4] sm:$0xf]
    %v1564 = vld [vmem:[%s5 + $0x8] sm:$0xf]
    %v1565 = vld [vmem:[%s5 + $0xc] sm:$0xf]
    %v1566 = vld [vmem:[%s7 + $0x6] sm:$0x1]
    %v1567 = vlaneseq
    %v1568 = vshrl.u32 %v1567, 7
    %v1569 = vsub.s32 0, %v1568
    %v1570 = vrot.slane %v1566, %v1569
    %v1575 = vunpack.c.l.b16 %v1562
    %v1576 = vunpack.c.l.b16 %v1563
    %v1577 = vunpack.c.l.b16 %v1564
    %v1578 = vunpack.c.l.b16 %v1565
    %v1579 = vpack.c.b16 %v1576, %v1575
    %v1580 = vpack.c.b16 %v1578, %v1577
    %v1584 = vsel %vm741, %v1558, 0
    %v1587 = vsel %vm741, %v1559, 0
    %v1590 = vsel %vm741, %v1560, 0
    %v1593 = vsel %vm741, %v1561, 0
    %1595 = vmatprep.subr.bf16.mxu0 0
    %1596 = vmatpush1.bf16.msra.mxu0 0
    %1597 = vmatprep.subr.bf16.mxu0 0
    %1598 = vmatpush1.bf16.msra.mxu0 0
    %1599 = vmatprep.subr.bf16.mxu0 0
    %1600 = vmatpush1.bf16.msra.mxu0 0
    %1601 = vmatprep.subr.bf16.mxu0 0
    %1602 = vmatpush1.bf16.msra.mxu0 0
    %1603 = vmatprep.subr.bf16.mxu0 0
    %1604 = vmatpush1.bf16.msra.mxu0 0
    %1605 = vmatprep.subr.bf16.mxu0 0
    %1606 = vmatpush1.bf16.msra.mxu0 0
    %1607 = vmatprep.subr.bf16.mxu0 0
    %1608 = vmatpush1.bf16.msra.mxu0 %v1580
    %1609 = vmatprep.subr.bf16.mxu0 0
    %1610 = vmatpush1.bf16.msra.mxu0 %v1579
    %1611 = vmatprep.subr.bf16.mxu0 0
    %1612 = vmatpush2.bf16.msra.mxu0 0
    %1613 = vmatprep.subr.bf16.mxu0 0
    %1614 = vmatpush2.bf16.msra.mxu0 0
    %1615 = vmatprep.subr.bf16.mxu0 0
    %1616 = vmatpush2.bf16.msra.mxu0 0
    %1617 = vmatprep.subr.bf16.mxu0 0
    %1618 = vmatpush2.bf16.msra.mxu0 0
    %1619 = vmatprep.subr.bf16.mxu0 0
    %1620 = vmatpush2.bf16.msra.mxu0 0
    %1621 = vmatprep.subr.bf16.mxu0 0
    %1622 = vmatpush2.bf16.msra.mxu0 0
    %1623 = vmatprep.subr.bf16.mxu0 0
    %1624 = vmatpush2.bf16.msra.mxu0 0
    %1625 = vmatprep.subr.bf16.mxu0 0
    %1626 = vmatpush2.bf16.msra.mxu0 0
    %1627 = vmatprep.mubr.bf16.mxu0 0
    %1628 = vmatmul.mubr.bf16.gmra.mxu0 %v1584
    %v1629 = vpop.f32.mrf.mxu0
    %v1630 = vadd.f32 %v1570, %v1629
    %v1631 = vpop.f32.mrf.mxu0
    %v1632 = vpop.f32.mrf.mxu0
    %v1633 = vadd.f32 %v1570, %v1632
    %v1634 = vpop.f32.mrf.mxu0
    %1635 = vmatprep.mubr.bf16.mxu0 0
    %1636 = vmatmul.mubr.bf16.gmra.mxu0 %v1587
    %v1637 = vpop.f32.mrf.mxu0
    %v1638 = vadd.f32 %v1570, %v1637
    %v1639 = vpop.f32.mrf.mxu0
    %v1640 = vpop.f32.mrf.mxu0
    %v1641 = vadd.f32 %v1570, %v1640
    %v1642 = vpop.f32.mrf.mxu0
    %1643 = vmatprep.mubr.bf16.mxu0 0
    %1644 = vmatmul.mubr.bf16.gmra.mxu0 %v1590
    %v1645 = vpop.f32.mrf.mxu0
    %v1646 = vadd.f32 %v1570, %v1645
    %v1647 = vpop.f32.mrf.mxu0
    %v1648 = vpop.f32.mrf.mxu0
    %v1649 = vadd.f32 %v1570, %v1648
    %v1650 = vpop.f32.mrf.mxu0
    %1651 = vmatprep.mubr.bf16.mxu0 0
    %1652 = vmatmul.mubr.bf16.gmra.mxu0 %v1593
    %v1653 = vpop.f32.mrf.mxu0
    %v1654 = vadd.f32 %v1570, %v1653
    %v1655 = vpop.f32.mrf.mxu0
    %v1656 = vpop.f32.mrf.mxu0
    %v1657 = vadd.f32 %v1570, %v1656
    %v1658 = vpop.f32.mrf.mxu0
    %1659 = vdwg.mxu0
    %v1660 = vmax.f32 %v1630, 0.0
    %v1661 = vmax.f32 %v1633, 0.0
    %v1662 = vmax.f32 %v1638, 0.0
    %v1663 = vmax.f32 %v1641, 0.0
    %v1664 = vmax.f32 %v1646, 0.0
    %v1665 = vmax.f32 %v1649, 0.0
    %v1666 = vmax.f32 %v1654, 0.0
    %v1667 = vmax.f32 %v1657, 0.0
    %v1668 = vpack.c.bf16 %v1661, %v1660
    %v1669 = vpack.c.bf16 %v1663, %v1662
    %v1670 = vpack.c.bf16 %v1665, %v1664
    %v1671 = vpack.c.bf16 %v1667, %v1666
    %v1672 = vld [vmem:[%s6] sm:$0xf]
    %v1673 = vld [vmem:[%s6 + $0x4] sm:$0xf]
    %v1674 = vld [vmem:[%s6 + $0x8] sm:$0xf]
    %v1675 = vld [vmem:[%s6 + $0xc] sm:$0xf]
    %v1676 = vld [vmem:[%s6 + $0x10] sm:$0xf]
    %v1677 = vld [vmem:[%s6 + $0x14] sm:$0xf]
    %v1678 = vld [vmem:[%s6 + $0x18] sm:$0xf]
    %v1679 = vld [vmem:[%s6 + $0x1c] sm:$0xf]
    %v1680 = vld [vmem:[%s7 + $0x7] sm:$0x1]
    %v1681 = vlaneseq
    %v1682 = vshrl.u32 %v1681, 7
    %v1683 = vsub.s32 0, %v1682
    %v1684 = vrot.slane %v1680, %v1683
    %v1693 = vunpack.c.l.b16 %v1672
    %v1694 = vunpack.c.l.b16 %v1673
    %v1695 = vunpack.c.l.b16 %v1674
    %v1696 = vunpack.c.l.b16 %v1675
    %v1697 = vunpack.c.l.b16 %v1676
    %v1698 = vunpack.c.l.b16 %v1677
    %v1699 = vunpack.c.l.b16 %v1678
    %v1700 = vunpack.c.l.b16 %v1679
    %v1701 = vpack.c.b16 %v1694, %v1693
    %v1702 = vpack.c.b16 %v1696, %v1695
    %v1703 = vpack.c.b16 %v1698, %v1697
    %v1704 = vpack.c.b16 %v1700, %v1699
    %vm1709 = vcmask 523264
    %v1711 = vsel %vm1709, %v1668, 0
    %v1714 = vsel %vm1709, %v1669, 0
    %v1717 = vsel %vm1709, %v1670, 0
    %v1720 = vsel %vm1709, %v1671, 0
    %1722 = vmatprep.subr.bf16.mxu0 0
    %1723 = vmatpush1.bf16.msra.mxu0 0
    %1724 = vmatprep.subr.bf16.mxu0 0
    %1725 = vmatpush1.bf16.msra.mxu0 0
    %1726 = vmatprep.subr.bf16.mxu0 0
    %1727 = vmatpush1.bf16.msra.mxu0 0
    %1728 = vmatprep.subr.bf16.mxu0 0
    %1729 = vmatpush1.bf16.msra.mxu0 0
    %1730 = vmatprep.subr.bf16.mxu0 0
    %1731 = vmatpush1.bf16.msra.mxu0 %v1704
    %1732 = vmatprep.subr.bf16.mxu0 0
    %1733 = vmatpush1.bf16.msra.mxu0 %v1703
    %1734 = vmatprep.subr.bf16.mxu0 0
    %1735 = vmatpush1.bf16.msra.mxu0 %v1702
    %1736 = vmatprep.subr.bf16.mxu0 0
    %1737 = vmatpush1.bf16.msra.mxu0 %v1701
    %1738 = vmatprep.subr.bf16.mxu0 0
    %1739 = vmatpush2.bf16.msra.mxu0 0
    %1740 = vmatprep.subr.bf16.mxu0 0
    %1741 = vmatpush2.bf16.msra.mxu0 0
    %1742 = vmatprep.subr.bf16.mxu0 0
    %1743 = vmatpush2.bf16.msra.mxu0 0
    %1744 = vmatprep.subr.bf16.mxu0 0
    %1745 = vmatpush2.bf16.msra.mxu0 0
    %1746 = vmatprep.subr.bf16.mxu0 0
    %1747 = vmatpush2.bf16.msra.mxu0 0
    %1748 = vmatprep.subr.bf16.mxu0 0
    %1749 = vmatpush2.bf16.msra.mxu0 0
    %1750 = vmatprep.subr.bf16.mxu0 0
    %1751 = vmatpush2.bf16.msra.mxu0 0
    %1752 = vmatprep.subr.bf16.mxu0 0
    %1753 = vmatpush2.bf16.msra.mxu0 0
    %1754 = vmatprep.mubr.bf16.mxu0 0
    %1755 = vmatmul.mubr.bf16.gmra.mxu0 %v1711
    %v1756 = vpop.f32.mrf.mxu0
    %v1757 = vadd.f32 %v1684, %v1756
    %v1758 = vpop.f32.mrf.mxu0
    %v1759 = vpop.f32.mrf.mxu0
    %v1760 = vadd.f32 %v1684, %v1759
    %v1761 = vpop.f32.mrf.mxu0
    %1762 = vmatprep.mubr.bf16.mxu0 0
    %1763 = vmatmul.mubr.bf16.gmra.mxu0 %v1714
    %v1764 = vpop.f32.mrf.mxu0
    %v1765 = vadd.f32 %v1684, %v1764
    %v1766 = vpop.f32.mrf.mxu0
    %v1767 = vpop.f32.mrf.mxu0
    %v1768 = vadd.f32 %v1684, %v1767
    %v1769 = vpop.f32.mrf.mxu0
    %1770 = vmatprep.mubr.bf16.mxu0 0
    %1771 = vmatmul.mubr.bf16.gmra.mxu0 %v1717
    %v1772 = vpop.f32.mrf.mxu0
    %v1773 = vadd.f32 %v1684, %v1772
    %v1774 = vpop.f32.mrf.mxu0
    %v1775 = vpop.f32.mrf.mxu0
    %v1776 = vadd.f32 %v1684, %v1775
    %v1777 = vpop.f32.mrf.mxu0
    %1778 = vmatprep.mubr.bf16.mxu0 0
    %1779 = vmatmul.mubr.bf16.gmra.mxu0 %v1720
    %v1780 = vpop.f32.mrf.mxu0
    %v1781 = vadd.f32 %v1684, %v1780
    %v1782 = vpop.f32.mrf.mxu0
    %v1783 = vpop.f32.mrf.mxu0
    %v1784 = vadd.f32 %v1684, %v1783
    %v1785 = vpop.f32.mrf.mxu0
    %1786 = vdwg.mxu0
    %v1787 = vadd.f32 %v1550, %v1757
    %v1788 = vadd.f32 %v1551, %v1760
    %v1789 = vadd.f32 %v1552, %v1765
    %v1790 = vadd.f32 %v1553, %v1768
    %v1791 = vadd.f32 %v1554, %v1773
    %v1792 = vadd.f32 %v1555, %v1776
    %v1793 = vadd.f32 %v1556, %v1781
    %v1794 = vadd.f32 %v1557, %v1784
    %v1795 = vld [vmem:[%s7 + $0x8] sm:$0x1]
    %v1796 = vld [vmem:[%s7 + $0x9] sm:$0x1]
    %v1797 = vsel %vm741, %v1787, 0.0
    %1798 = vadd.xlane.f32.xlu0 %v1797
    %v1799 = vpop.xlane.xlu0 %1798
    %v1800 = vsel %vm741, %v1788, 0.0
    %1801 = vadd.xlane.f32.xlu0 %v1800
    %v1802 = vpop.xlane.xlu0 %1801
    %v1803 = vsel %vm741, %v1789, 0.0
    %1804 = vadd.xlane.f32.xlu0 %v1803
    %v1805 = vpop.xlane.xlu0 %1804
    %v1806 = vsel %vm741, %v1790, 0.0
    %1807 = vadd.xlane.f32.xlu0 %v1806
    %v1808 = vpop.xlane.xlu0 %1807
    %v1809 = vsel %vm741, %v1791, 0.0
    %1810 = vadd.xlane.f32.xlu0 %v1809
    %v1811 = vpop.xlane.xlu0 %1810
    %v1812 = vsel %vm741, %v1792, 0.0
    %1813 = vadd.xlane.f32.xlu0 %v1812
    %v1814 = vpop.xlane.xlu0 %1813
    %v1815 = vsel %vm741, %v1793, 0.0
    %1816 = vadd.xlane.f32.xlu0 %v1815
    %v1817 = vpop.xlane.xlu0 %1816
    %v1818 = vsel %vm741, %v1794, 0.0
    %1819 = vadd.xlane.f32.xlu0 %v1818
    %v1820 = vpop.xlane.xlu0 %1819
    %v1821 = vmul.f32 %v1799, %v1453
    %v1822 = vmul.f32 %v1802, %v1453
    %v1823 = vmul.f32 %v1805, %v1453
    %v1824 = vmul.f32 %v1808, %v1453
    %v1825 = vmul.f32 %v1811, %v1453
    %v1826 = vmul.f32 %v1814, %v1453
    %v1827 = vmul.f32 %v1817, %v1453
    %v1828 = vmul.f32 %v1820, %v1453
    %v1829 = vsub.f32 %v1787, %v1821
    %v1830 = vsub.f32 %v1788, %v1822
    %v1831 = vsub.f32 %v1789, %v1823
    %v1832 = vsub.f32 %v1790, %v1824
    %v1833 = vsub.f32 %v1791, %v1825
    %v1834 = vsub.f32 %v1792, %v1826
    %v1835 = vsub.f32 %v1793, %v1827
    %v1836 = vsub.f32 %v1794, %v1828
    %v1837 = vmul.f32 %v1829, %v1829
    %v1838 = vmul.f32 %v1830, %v1830
    %v1839 = vmul.f32 %v1831, %v1831
    %v1840 = vmul.f32 %v1832, %v1832
    %v1841 = vmul.f32 %v1833, %v1833
    %v1842 = vmul.f32 %v1834, %v1834
    %v1843 = vmul.f32 %v1835, %v1835
    %v1844 = vmul.f32 %v1836, %v1836
    %v1845 = vsel %vm741, %v1837, 0.0
    %1846 = vadd.xlane.f32.xlu0 %v1845
    %v1847 = vpop.xlane.xlu0 %1846
    %v1848 = vsel %vm741, %v1838, 0.0
    %1849 = vadd.xlane.f32.xlu0 %v1848
    %v1850 = vpop.xlane.xlu0 %1849
    %v1851 = vsel %vm741, %v1839, 0.0
    %1852 = vadd.xlane.f32.xlu0 %v1851
    %v1853 = vpop.xlane.xlu0 %1852
    %v1854 = vsel %vm741, %v1840, 0.0
    %1855 = vadd.xlane.f32.xlu0 %v1854
    %v1856 = vpop.xlane.xlu0 %1855
    %v1857 = vsel %vm741, %v1841, 0.0
    %1858 = vadd.xlane.f32.xlu0 %v1857
    %v1859 = vpop.xlane.xlu0 %1858
    %v1860 = vsel %vm741, %v1842, 0.0
    %1861 = vadd.xlane.f32.xlu0 %v1860
    %v1862 = vpop.xlane.xlu0 %1861
    %v1863 = vsel %vm741, %v1843, 0.0
    %1864 = vadd.xlane.f32.xlu0 %v1863
    %v1865 = vpop.xlane.xlu0 %1864
    %v1866 = vsel %vm741, %v1844, 0.0
    %1867 = vadd.xlane.f32.xlu0 %v1866
    %v1868 = vpop.xlane.xlu0 %1867
    %v1869 = vmul.f32 %v1847, %v1453
    %v1870 = vmul.f32 %v1850, %v1453
    %v1871 = vmul.f32 %v1853, %v1453
    %v1872 = vmul.f32 %v1856, %v1453
    %v1873 = vmul.f32 %v1859, %v1453
    %v1874 = vmul.f32 %v1862, %v1453
    %v1875 = vmul.f32 %v1865, %v1453
    %v1876 = vmul.f32 %v1868, %v1453
    %v1877 = vadd.f32 %v1869, 1e-05
    %v1878 = vadd.f32 %v1870, 1e-05
    %v1879 = vadd.f32 %v1871, 1e-05
    %v1880 = vadd.f32 %v1872, 1e-05
    %v1881 = vadd.f32 %v1873, 1e-05
    %v1882 = vadd.f32 %v1874, 1e-05
    %v1883 = vadd.f32 %v1875, 1e-05
    %v1884 = vadd.f32 %v1876, 1e-05
    %v1885 = vrsqrt.pop %v1877
    %v1886 = vrsqrt.pop %v1878
    %v1887 = vrsqrt.pop %v1879
    %v1888 = vrsqrt.pop %v1880
    %v1889 = vrsqrt.pop %v1881
    %v1890 = vrsqrt.pop %v1882
    %v1891 = vrsqrt.pop %v1883
    %v1892 = vrsqrt.pop %v1884
    %v1893 = vmul.f32 %v1829, %v1885
    %v1894 = vmul.f32 %v1830, %v1886
    %v1895 = vmul.f32 %v1831, %v1887
    %v1896 = vmul.f32 %v1832, %v1888
    %v1897 = vmul.f32 %v1833, %v1889
    %v1898 = vmul.f32 %v1834, %v1890
    %v1899 = vmul.f32 %v1835, %v1891
    %v1900 = vmul.f32 %v1836, %v1892
    %v1901 = vlaneseq
    %v1902 = vshrl.u32 %v1901, 7
    %v1903 = vsub.s32 0, %v1902
    %v1904 = vrot.slane %v1795, %v1903
    %v1905 = vmul.f32 %v1893, %v1904
    %v1906 = vmul.f32 %v1894, %v1904
    %v1907 = vmul.f32 %v1895, %v1904
    %v1908 = vmul.f32 %v1896, %v1904
    %v1909 = vmul.f32 %v1897, %v1904
    %v1910 = vmul.f32 %v1898, %v1904
    %v1911 = vmul.f32 %v1899, %v1904
    %v1912 = vmul.f32 %v1900, %v1904
    %v1913 = vlaneseq
    %v1914 = vshrl.u32 %v1913, 7
    %v1915 = vsub.s32 0, %v1914
    %v1916 = vrot.slane %v1796, %v1915
    %v1917 = vadd.f32 %v1905, %v1916
    %v1918 = vadd.f32 %v1906, %v1916
    %v1919 = vadd.f32 %v1907, %v1916
    %v1920 = vadd.f32 %v1908, %v1916
    %v1921 = vadd.f32 %v1909, %v1916
    %v1922 = vadd.f32 %v1910, %v1916
    %v1923 = vadd.f32 %v1911, %v1916
    %v1924 = vadd.f32 %v1912, %v1916
    %1925 = vst.msk [vmem:[#allocation2] sm:$0xff] %vm741, %v1917
    %1926 = vst.msk [vmem:[#allocation2 + $0x8] sm:$0xff] %vm741, %v1918
    %1927 = vst.msk [vmem:[#allocation2 + $0x10] sm:$0xff] %vm741, %v1919
    %1928 = vst.msk [vmem:[#allocation2 + $0x18] sm:$0xff] %vm741, %v1920
    %1929 = vst.msk [vmem:[#allocation2 + $0x20] sm:$0xff] %vm741, %v1921
    %1930 = vst.msk [vmem:[#allocation2 + $0x28] sm:$0xff] %vm741, %v1922
    %1931 = vst.msk [vmem:[#allocation2 + $0x30] sm:$0xff] %vm741, %v1923
    %1932 = vst.msk [vmem:[#allocation2 + $0x38] sm:$0xff] %vm741, %v1924
    // Predicated region
    $region34: #{tranmodel_forward.1} parent=1 // pred_check
      _
    $region35: #{tranmodel_forward.1} parent=1 // pred_check_branch
      %1934 = sbr.rel (0) target = $region37
    $region36: #{tranmodel_forward.1} parent=1 // pred_region
      %s1936 = ssub.s32 1024, 1024
      %1937 = vsyncadd [#allocation3], %s1936
      %s1938 = sshll.u32 [#allocation2], 4
      %s1939 = int_to_ptr.vmem [resolvable:$true] %s1938
      %1944 = dma.vmem_to_hbm [thread:$0]  %s1939, 1024, %s8, [#allocation3], 128, 128, 8
    $region37: #{tranmodel_forward.1} parent=1 // pred_fallthru
      _
    // Predicated region
    $region38: #{tranmodel_forward.1} parent=1 // pred_check
      _
    $region39: #{tranmodel_forward.1} parent=1 // pred_check_branch
      %1946 = sbr.rel (0) target = $region41
    $region40: #{tranmodel_forward.1} parent=1 // pred_region
      %1947 = dma.done [#allocation3], 1024
    $region41: #{tranmodel_forward.1} parent=1 // pred_fallthru
      _
    %1948 = vsyncpa [#allocation3], 1

</llo_original>
